<compile_context>
chip_gen: v6e
topology: v6e:2x2x1
jax: 0.10.0
libtpu: 0.0.40
codegen_flags: <defaults>
</compile_context>

<pallas_src>
import jax
import jax.numpy as jnp
from jax.experimental import pallas as pl
from jax.experimental.pallas import tpu as pltpu


def _round_up(v, m):
    return (v + m - 1) // m * m


def _pad2d(a, rows, cols, dtype):
    """Cast to dtype and zero-pad to (rows, cols); no-op copy if already exact."""
    a = a.astype(dtype)
    if a.shape == (rows, cols):
        return a
    return jnp.zeros((rows, cols), dtype).at[: a.shape[0], : a.shape[1]].set(a)


def _make_ffn_kernel(d_real, d_pad):
    """Kernel closure over the real / padded d_model sizes (both static)."""
    need_mask = d_pad != d_real
    inv_d = 1.0 / float(d_real)

    def ffn_kernel(x_ref, w1_ref, b1_ref, w2_ref, b2_ref, g_ref, beta_ref,
                   o_ref, acc_ref):
        # x: (TN, Dp)  w1: (Dp, TF)  b1: (1, TF)  w2: (TF, Dp)
        # b2/g/beta: (1, Dp)  o: (TN, Dp)  acc: (TN, Dp) f32 scratch
        f = pl.program_id(1)

        @pl.when(f == 0)
        def _():
            acc_ref[...] = jnp.zeros_like(acc_ref)

        w1 = w1_ref[...]
        w2 = w2_ref[...]

        # Single load of the token tile; reuse for matmul operand and residual.
        x = x_ref[...]
        xm = x.astype(w1.dtype)           # bf16 weights -> bf16 MXU, f32 acc

        # linear1 (hidden chunk) + ReLU
        h = jnp.dot(xm, w1, preferred_element_type=jnp.float32)
        h = jnp.maximum(h + b1_ref[...], 0.0)

        # linear2 (partial over this hidden chunk), accumulate in f32.
        acc_ref[...] += jnp.dot(h.astype(w2.dtype), w2,
                                preferred_element_type=jnp.float32)

        @pl.when(f == pl.num_programs(1) - 1)
        def _():
            b2 = b2_ref[...]
            g = g_ref[...]
            beta = beta_ref[...]

            # residual; padded d_model columns of x, acc and b2 are exactly 0,
            # so the row sums below equal sums over the real D columns.
            z = x.astype(jnp.float32) + acc_ref[...] + b2

            # LayerNorm over the real d_model columns (eps=1e-5, affine).
            mean = jnp.sum(z, axis=-1, keepdims=True) * inv_d
            cent = z - mean
            if need_mask:
                col = jax.lax.broadcasted_iota(jnp.int32, cent.shape, 1)
                cent_sq = jnp.where(col < d_real, cent, 0.0)
            else:
                cent_sq = cent
            var = jnp.sum(cent_sq * cent_sq, axis=-1, keepdims=True) * inv_d
            inv = jax.lax.rsqrt(var + 1e-5)

            # gamma/beta are zero in padded columns -> padded output lanes = 0.
            o_ref[...] = (cent * inv * g + beta).astype(o_ref.dtype)

    return ffn_kernel


# Memoized: whether this JAX version accepts pipeline_mode=pl.Buffered(1).
_SINGLE_BUFFER_OK = True


def ffn_layer_forward(tgt, w1, b1, w2, b2, gamma, beta, *,
                      block_tokens=1024, f_chunk=2048,
                      param_dtype=jnp.bfloat16):
    """FFNLayer.forward_post. tgt: (S, B, D) -> (S, B, D).

    w1: (D, F) = linear1.weight^T, b1: (F,) or (1, F)
    w2: (F, D) = linear2.weight^T, b2: (D,) or (1, D)
    gamma/beta: LayerNorm affine, (D,) or (1, D)
    param_dtype: matmul dtype for w1/w2 and the activation operand.  Default
      bf16 (full MXU rate, f32 accumulation; epilogue stays f32).  Pass
      jnp.float32 for full-precision matmuls, or None to keep the weight dtype.
    Parameters may be passed pre-padded (multiples of 128) and pre-cast; the
    pad helpers detect matching shape/dtype and skip the copy.  Padded columns
    of w2/b2/gamma/beta (and of a pre-padded x) must be zero.
    """
    global _SINGLE_BUFFER_OK

    S, B, D = tgt.shape
    F = w1.shape[1]
    N = S * B
    x = tgt.reshape(N, D)

    # Pad feature axes to lane width (128).
    Dp = _round_up(D, 128)
    Fp = _round_up(F, 128)

    # Token tile: cap by block_tokens; if that would leave a single grid step,
    # split into two so both v7x TensorCores get work.
    TN = min(block_tokens, _round_up(N, 8))
    if N > 8 and _round_up(N, TN) == TN:
        TN = _round_up(-(-N // 2), 8)
    Np = _round_up(N, TN)

    # Hidden-axis chunk size (caps the live (TN, TF) intermediate).
    TF = min(Fp, _round_up(f_chunk, 128))
    Fp = _round_up(Fp, TF)
    n_f = Fp // TF

    w_dtype = w1.dtype if param_dtype is None else param_dtype

    # Activations: skip the pad (and the final slice) when not needed.
    x_p = x if (Np == N and Dp == D) else (
        jnp.zeros((Np, Dp), x.dtype).at[:N, :D].set(x))

    # Parameters (no-op when already padded/cast).
    w1_p = _pad2d(w1, Dp, Fp, w_dtype)
    w2_p = _pad2d(w2, Fp, Dp, w_dtype)
    b1_p = _pad2d(jnp.reshape(b1, (1, -1)), 1, Fp, jnp.float32)
    b2_p = _pad2d(jnp.reshape(b2, (1, -1)), 1, Dp, jnp.float32)
    g_p = _pad2d(jnp.reshape(gamma, (1, -1)), 1, Dp, jnp.float32)
    beta_p = _pad2d(jnp.reshape(beta, (1, -1)), 1, Dp, jnp.float32)

    kernel = _make_ffn_kernel(D, Dp)
    grid = (Np // TN, n_f)
    out_itemsize = jnp.dtype(tgt.dtype).itemsize

    cost = pl.CostEstimate(
        flops=4 * N * D * F,              # two (N,D)x(D,F)-sized matmuls
        transcendentals=N,                # one rsqrt per row
        bytes_accessed=(x_p.size * x_p.dtype.itemsize
                        + Np * Dp * out_itemsize
                        + w1_p.size * w1_p.dtype.itemsize
                        + w2_p.size * w2_p.dtype.itemsize
                        + (b1_p.size + b2_p.size + g_p.size + beta_p.size) * 4),
    )

    def _run(single_buffer):
        def param_spec(shape, index_map, invariant):
            if invariant and single_buffer:
                # Grid-invariant operand: one resident copy (halves weight VMEM).
                return pl.BlockSpec(shape, index_map,
                                    pipeline_mode=pl.Buffered(1))
            return pl.BlockSpec(shape, index_map)

        w_inv = (n_f == 1)   # weights are grid-invariant iff one hidden chunk
        in_specs = [
            pl.BlockSpec((TN, Dp), lambda i, f: (i, 0)),            # x (pipelined)
            param_spec((Dp, TF), lambda i, f: (0, f), w_inv),       # w1
            param_spec((1, TF), lambda i, f: (0, f), w_inv),        # b1
            param_spec((TF, Dp), lambda i, f: (f, 0), w_inv),       # w2
            param_spec((1, Dp), lambda i, f: (0, 0), True),         # b2
            param_spec((1, Dp), lambda i, f: (0, 0), True),         # gamma
            param_spec((1, Dp), lambda i, f: (0, 0), True),         # beta
        ]
        return pl.pallas_call(
            kernel,
            out_shape=jax.ShapeDtypeStruct((Np, Dp), tgt.dtype),
            grid=grid,
            in_specs=in_specs,
            out_specs=pl.BlockSpec((TN, Dp), lambda i, f: (i, 0)),
            scratch_shapes=[pltpu.VMEM((TN, Dp), jnp.float32)],
            compiler_params=pltpu.CompilerParams(
                dimension_semantics=("parallel", "arbitrary"),
                vmem_limit_bytes=64 << 20,
            ),
            cost_estimate=cost,
        )(x_p, w1_p, b1_p, w2_p, b2_p, g_p, beta_p)

    if _SINGLE_BUFFER_OK:
        try:
            out = _run(True)
        except Exception:
            # pl.Buffered(1) not supported by this JAX/Mosaic build; fall back
            # to default double-buffering (correctness identical).
            _SINGLE_BUFFER_OK = False
            out = _run(False)
    else:
        out = _run(False)

    if Np == N and Dp == D:
        return out.reshape(S, B, D)
    return out[:N, :D].reshape(S, B, D)


def _xavier_uniform(key, shape, dtype=jnp.float32):
    fan_in, fan_out = shape[0], shape[1]
    limit = (6.0 / (fan_in + fan_out)) ** 0.5
    return jax.random.uniform(key, shape, dtype, minval=-limit, maxval=limit)


if __name__ == "__main__":
    # Small shapes consistent with the decoder FFN: seq=8, batch=2, d_model=32,
    # dim_feedforward=64.
    S, B, D, FF = 8, 2, 32, 64

    key = jax.random.PRNGKey(0)
    k_tgt, k_w1, k_b1, k_w2, k_b2 = jax.random.split(key, 5)

    tgt = jax.random.normal(k_tgt, (S, B, D), dtype=jnp.float32)

    # Deterministic synthetic params (xavier_uniform weights like
    # _reset_parameters; small uniform biases; LayerNorm affine = ones/zeros).
    w1 = _xavier_uniform(k_w1, (D, FF))               # linear1.weight^T
    b1 = jax.random.uniform(k_b1, (1, FF), minval=-0.1, maxval=0.1)
    w2 = _xavier_uniform(k_w2, (FF, D))               # linear2.weight^T
    b2 = jax.random.uniform(k_b2, (1, D), minval=-0.1, maxval=0.1)
    gamma = jnp.ones((1, D), jnp.float32)
    beta = jnp.zeros((1, D), jnp.float32)

    # Full-precision matmul path (tight check) ...
    out_f32 = ffn_layer_forward(tgt, w1, b1, w2, b2, gamma, beta,
                                param_dtype=jnp.float32)
    # ... and the default bf16-MXU path (precision contract: bf16 matmuls,
    # f32 accumulation / residual / LayerNorm -> looser tolerance).
    out_bf16 = ffn_layer_forward(tgt, w1, b1, w2, b2, gamma, beta)
    out_f32, out_bf16 = jax.block_until_ready((out_f32, out_bf16))

    # Pure-JAX reference (dropout=0.0 is the identity).
    x = tgt.reshape(S * B, D)
    h = jnp.maximum(x @ w1 + b1, 0.0)
    z = x + (h @ w2 + b2)
    mu = jnp.mean(z, axis=-1, keepdims=True)
    var = jnp.mean((z - mu) ** 2, axis=-1, keepdims=True)
    ref = ((z - mu) / jnp.sqrt(var + 1e-5) * gamma + beta).reshape(S, B, D)

    assert jnp.allclose(out_f32, ref, atol=1e-4, rtol=1e-4), "f32 path mismatch"
    assert jnp.allclose(out_bf16, ref, atol=5e-2, rtol=5e-2), "bf16 path mismatch"

    print("KERNEL_OK")
</pallas_src>

<mosaic_0001>
module attributes {stable_mosaic.version = 11 : i64} {
  func.func @ffn_kernel(%arg0: i32, %arg1: i32, %arg2: memref<8x128xf32, #tpu.memory_space<vmem>>, %arg3: memref<128x128xf32, #tpu.memory_space<vmem>>, %arg4: memref<1x128xf32, #tpu.memory_space<vmem>>, %arg5: memref<128x128xf32, #tpu.memory_space<vmem>>, %arg6: memref<1x128xf32, #tpu.memory_space<vmem>>, %arg7: memref<1x128xf32, #tpu.memory_space<vmem>>, %arg8: memref<1x128xf32, #tpu.memory_space<vmem>>, %arg9: memref<8x128xf32, #tpu.memory_space<vmem>>, %arg10: memref<8x128xf32, #tpu.memory_space<vmem>>) attributes {dimension_semantics = [#tpu.dimension_semantics<parallel>, #tpu.dimension_semantics<arbitrary>], iteration_bounds = array<i64: 2, 1>, scalar_prefetch = 0 : i64, scratch_operands = 1 : i64, tpu.core_type = #tpu.core_type<tc>, window_params = [{transform_indices = @transform_0, window_bounds = array<i64: 8, 128>}, {pipeline_mode = #tpu.pipeline_mode<synchronous>, transform_indices = @transform_1, window_bounds = array<i64: 128, 128>}, {pipeline_mode = #tpu.pipeline_mode<synchronous>, transform_indices = @transform_2, window_bounds = array<i64: 1, 128>}, {pipeline_mode = #tpu.pipeline_mode<synchronous>, transform_indices = @transform_3, window_bounds = array<i64: 128, 128>}, {pipeline_mode = #tpu.pipeline_mode<synchronous>, transform_indices = @transform_4, window_bounds = array<i64: 1, 128>}, {pipeline_mode = #tpu.pipeline_mode<synchronous>, transform_indices = @transform_5, window_bounds = array<i64: 1, 128>}, {pipeline_mode = #tpu.pipeline_mode<synchronous>, transform_indices = @transform_6, window_bounds = array<i64: 1, 128>}, {transform_indices = @transform_7, window_bounds = array<i64: 8, 128>}]} {
    %c0_i32 = arith.constant 0 : i32
    %0 = arith.cmpi eq, %arg1, %c0_i32 : i32
    %1 = arith.extui %0 : i1 to i32
    %c0_i32_0 = arith.constant 0 : i32
    %2 = arith.cmpi ne, %1, %c0_i32_0 : i32
    scf.if %2 {
      %cst_16 = arith.constant 0.000000e+00 : f32
      %19 = vector.broadcast %cst_16 : f32 to vector<8x128xf32>
      %c0_17 = arith.constant 0 : index
      %c0_18 = arith.constant 0 : index
      %20 = vector.load %arg10[%c0_17, %c0_18] : memref<8x128xf32, #tpu.memory_space<vmem>>, vector<8x128xf32>
      tpu.vector_store %arg10[%c0_17, %c0_18], %19 {strides = array<i32>} : memref<8x128xf32, #tpu.memory_space<vmem>>, vector<8x128xf32>,
    } else {
    }
    %c0 = arith.constant 0 : index
    %c0_1 = arith.constant 0 : index
    %3 = vector.load %arg3[%c0, %c0_1] : memref<128x128xf32, #tpu.memory_space<vmem>>, vector<128x128xf32>
    %c0_2 = arith.constant 0 : index
    %c0_3 = arith.constant 0 : index
    %4 = vector.load %arg5[%c0_2, %c0_3] : memref<128x128xf32, #tpu.memory_space<vmem>>, vector<128x128xf32>
    %c0_4 = arith.constant 0 : index
    %c0_5 = arith.constant 0 : index
    %5 = vector.load %arg2[%c0_4, %c0_5] : memref<8x128xf32, #tpu.memory_space<vmem>>, vector<8x128xf32>
    %cst = arith.constant dense<0.000000e+00> : vector<8x128xf32>
    %6 = tpu.matmul %5, %3, %cst {dimension_numbers = #tpu.dot_dimension_numbers<[1], [0], [0], [1], [0, 0, 1, 1], [], []>} : vector<8x128xf32>, vector<128x128xf32>, vector<8x128xf32> -> vector<8x128xf32>
    %c0_6 = arith.constant 0 : index
    %c0_7 = arith.constant 0 : index
    %7 = vector.load %arg4[%c0_6, %c0_7] : memref<1x128xf32, #tpu.memory_space<vmem>>, vector<1x128xf32>
    %8 = vector.broadcast %7 : vector<1x128xf32> to vector<8x128xf32>
    %9 = arith.addf %6, %8 : vector<8x128xf32>
    %cst_8 = arith.constant 0.000000e+00 : f32
    %10 = vector.broadcast %cst_8 : f32 to vector<8x128xf32>
    %11 = arith.maximumf %9, %10 : vector<8x128xf32>
    %c0_9 = arith.constant 0 : index
    %c0_10 = arith.constant 0 : index
    %12 = vector.load %arg10[%c0_9, %c0_10] : memref<8x128xf32, #tpu.memory_space<vmem>>, vector<8x128xf32>
    %cst_11 = arith.constant dense<0.000000e+00> : vector<8x128xf32>
    %13 = tpu.matmul %11, %4, %cst_11 {dimension_numbers = #tpu.dot_dimension_numbers<[1], [0], [0], [1], [0, 0, 1, 1], [], []>} : vector<8x128xf32>, vector<128x128xf32>, vector<8x128xf32> -> vector<8x128xf32>
    %14 = arith.addf %12, %13 : vector<8x128xf32>
    %c0_12 = arith.constant 0 : index
    %c0_13 = arith.constant 0 : index
    %15 = vector.load %arg10[%c0_12, %c0_13] : memref<8x128xf32, #tpu.memory_space<vmem>>, vector<8x128xf32>
    tpu.vector_store %arg10[%c0_12, %c0_13], %14 {strides = array<i32>} : memref<8x128xf32, #tpu.memory_space<vmem>>, vector<8x128xf32>,
    %c0_i32_14 = arith.constant 0 : i32
    %16 = arith.cmpi eq, %arg1, %c0_i32_14 : i32
    %17 = arith.extui %16 : i1 to i32
    %c0_i32_15 = arith.constant 0 : i32
    %18 = arith.cmpi ne, %17, %c0_i32_15 : i32
    scf.if %18 {
      %c0_16 = arith.constant 0 : index
      %c0_17 = arith.constant 0 : index
      %19 = vector.load %arg6[%c0_16, %c0_17] : memref<1x128xf32, #tpu.memory_space<vmem>>, vector<1x128xf32>
      %c0_18 = arith.constant 0 : index
      %c0_19 = arith.constant 0 : index
      %20 = vector.load %arg7[%c0_18, %c0_19] : memref<1x128xf32, #tpu.memory_space<vmem>>, vector<1x128xf32>
      %c0_20 = arith.constant 0 : index
      %c0_21 = arith.constant 0 : index
      %21 = vector.load %arg8[%c0_20, %c0_21] : memref<1x128xf32, #tpu.memory_space<vmem>>, vector<1x128xf32>
      %c0_22 = arith.constant 0 : index
      %c0_23 = arith.constant 0 : index
      %22 = vector.load %arg10[%c0_22, %c0_23] : memref<8x128xf32, #tpu.memory_space<vmem>>, vector<8x128xf32>
      %23 = arith.addf %5, %22 : vector<8x128xf32>
      %24 = vector.broadcast %19 : vector<1x128xf32> to vector<8x128xf32>
      %25 = arith.addf %23, %24 : vector<8x128xf32>
      %cst_24 = arith.constant dense<0.000000e+00> : vector<8xf32>
      %26 = vector.multi_reduction <add>, %25, %cst_24 [1] : vector<8x128xf32> to vector<8xf32>
      %27 = vector.shape_cast %26 : vector<8xf32> to vector<8x1xf32>
      %cst_25 = arith.constant 3.125000e-02 : f32
      %28 = vector.broadcast %cst_25 : f32 to vector<8x1xf32>
      %29 = arith.mulf %27, %28 : vector<8x1xf32>
      %30 = vector.broadcast %29 : vector<8x1xf32> to vector<8x128xf32>
      %31 = arith.subf %25, %30 : vector<8x128xf32>
      %32 = tpu.iota {dimensions = array<i32: 1>} : vector<8x128xi32>
      %c32_i32 = arith.constant 32 : i32
      %33 = vector.broadcast %c32_i32 : i32 to vector<8x128xi32>
      %34 = arith.cmpi slt, %32, %33 : vector<8x128xi32>
      %cst_26 = arith.constant 0.000000e+00 : f32
      %35 = vector.broadcast %cst_26 : f32 to vector<8x128xf32>
      %36 = arith.select %34, %31, %35 : vector<8x128xi1>, vector<8x128xf32>
      %37 = arith.mulf %36, %36 : vector<8x128xf32>
      %cst_27 = arith.constant dense<0.000000e+00> : vector<8xf32>
      %38 = vector.multi_reduction <add>, %37, %cst_27 [1] : vector<8x128xf32> to vector<8xf32>
      %39 = vector.shape_cast %38 : vector<8xf32> to vector<8x1xf32>
      %cst_28 = arith.constant 3.125000e-02 : f32
      %40 = vector.broadcast %cst_28 : f32 to vector<8x1xf32>
      %41 = arith.mulf %39, %40 : vector<8x1xf32>
      %cst_29 = arith.constant 9.99999974E-6 : f32
      %42 = vector.broadcast %cst_29 : f32 to vector<8x1xf32>
      %43 = arith.addf %41, %42 : vector<8x1xf32>
      %44 = math.rsqrt %43 : vector<8x1xf32>
      %45 = vector.broadcast %44 : vector<8x1xf32> to vector<8x128xf32>
      %46 = arith.mulf %31, %45 : vector<8x128xf32>
      %47 = vector.broadcast %20 : vector<1x128xf32> to vector<8x128xf32>
      %48 = arith.mulf %46, %47 : vector<8x128xf32>
      %49 = vector.broadcast %21 : vector<1x128xf32> to vector<8x128xf32>
      %50 = arith.addf %48, %49 : vector<8x128xf32>
      %c0_30 = arith.constant 0 : index
      %c0_31 = arith.constant 0 : index
      %51 = vector.load %arg9[%c0_30, %c0_31] : memref<8x128xf32, #tpu.memory_space<vmem>>, vector<8x128xf32>
      tpu.vector_store %arg9[%c0_30, %c0_31], %50 {strides = array<i32>} : memref<8x128xf32, #tpu.memory_space<vmem>>, vector<8x128xf32>,
    } else {
    }
    return
  }
  func.func @transform_0(%arg0: i32, %arg1: i32) -> (i32, i32) {
    %c0_i32 = arith.constant 0 : i32
    %c0_i32_0 = arith.constant 0 : i32
    return %arg0, %c0_i32 : i32, i32
  }
  func.func @transform_1(%arg0: i32, %arg1: i32) -> (i32, i32) {
    %c0_i32 = arith.constant 0 : i32
    %c0_i32_0 = arith.constant 0 : i32
    return %c0_i32, %arg1 : i32, i32
  }
  func.func @transform_2(%arg0: i32, %arg1: i32) -> (i32, i32) {
    %c0_i32 = arith.constant 0 : i32
    %c0_i32_0 = arith.constant 0 : i32
    return %c0_i32, %arg1 : i32, i32
  }
  func.func @transform_3(%arg0: i32, %arg1: i32) -> (i32, i32) {
    %c0_i32 = arith.constant 0 : i32
    %c0_i32_0 = arith.constant 0 : i32
    return %arg1, %c0_i32 : i32, i32
  }
  func.func @transform_4(%arg0: i32, %arg1: i32) -> (i32, i32) {
    %c0_i32 = arith.constant 0 : i32
    %c0_i32_0 = arith.constant 0 : i32
    %c0_i32_1 = arith.constant 0 : i32
    return %c0_i32, %c0_i32_0 : i32, i32
  }
  func.func @transform_5(%arg0: i32, %arg1: i32) -> (i32, i32) {
    %c0_i32 = arith.constant 0 : i32
    %c0_i32_0 = arith.constant 0 : i32
    %c0_i32_1 = arith.constant 0 : i32
    return %c0_i32, %c0_i32_0 : i32, i32
  }
  func.func @transform_6(%arg0: i32, %arg1: i32) -> (i32, i32) {
    %c0_i32 = arith.constant 0 : i32
    %c0_i32_0 = arith.constant 0 : i32
    %c0_i32_1 = arith.constant 0 : i32
    return %c0_i32, %c0_i32_0 : i32, i32
  }
  func.func @transform_7(%arg0: i32, %arg1: i32) -> (i32, i32) {
    %c0_i32 = arith.constant 0 : i32
    %c0_i32_0 = arith.constant 0 : i32
    return %arg0, %c0_i32 : i32, i32
  }
}

module attributes {stable_mosaic.version = 11 : i64} {
  func.func @ffn_kernel(%arg0: i32, %arg1: i32, %arg2: memref<8x128xf32, #tpu.memory_space<vmem>>, %arg3: memref<128x128xf32, #tpu.memory_space<vmem>>, %arg4: memref<1x128xf32, #tpu.memory_space<vmem>>, %arg5: memref<128x128xf32, #tpu.memory_space<vmem>>, %arg6: memref<1x128xf32, #tpu.memory_space<vmem>>, %arg7: memref<1x128xf32, #tpu.memory_space<vmem>>, %arg8: memref<1x128xf32, #tpu.memory_space<vmem>>, %arg9: memref<8x128xf32, #tpu.memory_space<vmem>>, %arg10: memref<8x128xf32, #tpu.memory_space<vmem>>) attributes {dimension_semantics = [#tpu.dimension_semantics<parallel>, #tpu.dimension_semantics<arbitrary>], iteration_bounds = array<i64: 2, 1>, scalar_prefetch = 0 : i64, scratch_operands = 1 : i64, tpu.core_type = #tpu.core_type<tc>, window_params = [{transform_indices = @transform_0, window_bounds = array<i64: 8, 128>}, {transform_indices = @transform_1, window_bounds = array<i64: 128, 128>}, {transform_indices = @transform_2, window_bounds = array<i64: 1, 128>}, {transform_indices = @transform_3, window_bounds = array<i64: 128, 128>}, {pipeline_mode = #tpu.pipeline_mode<synchronous>, transform_indices = @transform_4, window_bounds = array<i64: 1, 128>}, {pipeline_mode = #tpu.pipeline_mode<synchronous>, transform_indices = @transform_5, window_bounds = array<i64: 1, 128>}, {pipeline_mode = #tpu.pipeline_mode<synchronous>, transform_indices = @transform_6, window_bounds = array<i64: 1, 128>}, {transform_indices = @transform_7, window_bounds = array<i64: 8, 128>}]} {
    %c0_i32 = arith.constant 0 : i32
    %0 = arith.cmpi eq, %arg1, %c0_i32 : i32
    %1 = arith.extui %0 : i1 to i32
    %c0_i32_0 = arith.constant 0 : i32
    %2 = arith.cmpi ne, %1, %c0_i32_0 : i32
    scf.if %2 {
      %cst_16 = arith.constant 0.000000e+00 : f32
      %19 = vector.broadcast %cst_16 : f32 to vector<8x128xf32>
      %c0_17 = arith.constant 0 : index
      %c0_18 = arith.constant 0 : index
      %20 = vector.load %arg10[%c0_17, %c0_18] : memref<8x128xf32, #tpu.memory_space<vmem>>, vector<8x128xf32>
      tpu.vector_store %arg10[%c0_17, %c0_18], %19 {strides = array<i32>} : memref<8x128xf32, #tpu.memory_space<vmem>>, vector<8x128xf32>,
    } else {
    }
    %c0 = arith.constant 0 : index
    %c0_1 = arith.constant 0 : index
    %3 = vector.load %arg3[%c0, %c0_1] : memref<128x128xf32, #tpu.memory_space<vmem>>, vector<128x128xf32>
    %c0_2 = arith.constant 0 : index
    %c0_3 = arith.constant 0 : index
    %4 = vector.load %arg5[%c0_2, %c0_3] : memref<128x128xf32, #tpu.memory_space<vmem>>, vector<128x128xf32>
    %c0_4 = arith.constant 0 : index
    %c0_5 = arith.constant 0 : index
    %5 = vector.load %arg2[%c0_4, %c0_5] : memref<8x128xf32, #tpu.memory_space<vmem>>, vector<8x128xf32>
    %cst = arith.constant dense<0.000000e+00> : vector<8x128xf32>
    %6 = tpu.matmul %5, %3, %cst {dimension_numbers = #tpu.dot_dimension_numbers<[1], [0], [0], [1], [0, 0, 1, 1], [], []>} : vector<8x128xf32>, vector<128x128xf32>, vector<8x128xf32> -> vector<8x128xf32>
    %c0_6 = arith.constant 0 : index
    %c0_7 = arith.constant 0 : index
    %7 = vector.load %arg4[%c0_6, %c0_7] : memref<1x128xf32, #tpu.memory_space<vmem>>, vector<1x128xf32>
    %8 = vector.broadcast %7 : vector<1x128xf32> to vector<8x128xf32>
    %9 = arith.addf %6, %8 : vector<8x128xf32>
    %cst_8 = arith.constant 0.000000e+00 : f32
    %10 = vector.broadcast %cst_8 : f32 to vector<8x128xf32>
    %11 = arith.maximumf %9, %10 : vector<8x128xf32>
    %c0_9 = arith.constant 0 : index
    %c0_10 = arith.constant 0 : index
    %12 = vector.load %arg10[%c0_9, %c0_10] : memref<8x128xf32, #tpu.memory_space<vmem>>, vector<8x128xf32>
    %cst_11 = arith.constant dense<0.000000e+00> : vector<8x128xf32>
    %13 = tpu.matmul %11, %4, %cst_11 {dimension_numbers = #tpu.dot_dimension_numbers<[1], [0], [0], [1], [0, 0, 1, 1], [], []>} : vector<8x128xf32>, vector<128x128xf32>, vector<8x128xf32> -> vector<8x128xf32>
    %14 = arith.addf %12, %13 : vector<8x128xf32>
    %c0_12 = arith.constant 0 : index
    %c0_13 = arith.constant 0 : index
    %15 = vector.load %arg10[%c0_12, %c0_13] : memref<8x128xf32, #tpu.memory_space<vmem>>, vector<8x128xf32>
    tpu.vector_store %arg10[%c0_12, %c0_13], %14 {strides = array<i32>} : memref<8x128xf32, #tpu.memory_space<vmem>>, vector<8x128xf32>,
    %c0_i32_14 = arith.constant 0 : i32
    %16 = arith.cmpi eq, %arg1, %c0_i32_14 : i32
    %17 = arith.extui %16 : i1 to i32
    %c0_i32_15 = arith.constant 0 : i32
    %18 = arith.cmpi ne, %17, %c0_i32_15 : i32
    scf.if %18 {
      %c0_16 = arith.constant 0 : index
      %c0_17 = arith.constant 0 : index
      %19 = vector.load %arg6[%c0_16, %c0_17] : memref<1x128xf32, #tpu.memory_space<vmem>>, vector<1x128xf32>
      %c0_18 = arith.constant 0 : index
      %c0_19 = arith.constant 0 : index
      %20 = vector.load %arg7[%c0_18, %c0_19] : memref<1x128xf32, #tpu.memory_space<vmem>>, vector<1x128xf32>
      %c0_20 = arith.constant 0 : index
      %c0_21 = arith.constant 0 : index
      %21 = vector.load %arg8[%c0_20, %c0_21] : memref<1x128xf32, #tpu.memory_space<vmem>>, vector<1x128xf32>
      %c0_22 = arith.constant 0 : index
      %c0_23 = arith.constant 0 : index
      %22 = vector.load %arg10[%c0_22, %c0_23] : memref<8x128xf32, #tpu.memory_space<vmem>>, vector<8x128xf32>
      %23 = arith.addf %5, %22 : vector<8x128xf32>
      %24 = vector.broadcast %19 : vector<1x128xf32> to vector<8x128xf32>
      %25 = arith.addf %23, %24 : vector<8x128xf32>
      %cst_24 = arith.constant dense<0.000000e+00> : vector<8xf32>
      %26 = vector.multi_reduction <add>, %25, %cst_24 [1] : vector<8x128xf32> to vector<8xf32>
      %27 = vector.shape_cast %26 : vector<8xf32> to vector<8x1xf32>
      %cst_25 = arith.constant 3.125000e-02 : f32
      %28 = vector.broadcast %cst_25 : f32 to vector<8x1xf32>
      %29 = arith.mulf %27, %28 : vector<8x1xf32>
      %30 = vector.broadcast %29 : vector<8x1xf32> to vector<8x128xf32>
      %31 = arith.subf %25, %30 : vector<8x128xf32>
      %32 = tpu.iota {dimensions = array<i32: 1>} : vector<8x128xi32>
      %c32_i32 = arith.constant 32 : i32
      %33 = vector.broadcast %c32_i32 : i32 to vector<8x128xi32>
      %34 = arith.cmpi slt, %32, %33 : vector<8x128xi32>
      %cst_26 = arith.constant 0.000000e+00 : f32
      %35 = vector.broadcast %cst_26 : f32 to vector<8x128xf32>
      %36 = arith.select %34, %31, %35 : vector<8x128xi1>, vector<8x128xf32>
      %37 = arith.mulf %36, %36 : vector<8x128xf32>
      %cst_27 = arith.constant dense<0.000000e+00> : vector<8xf32>
      %38 = vector.multi_reduction <add>, %37, %cst_27 [1] : vector<8x128xf32> to vector<8xf32>
      %39 = vector.shape_cast %38 : vector<8xf32> to vector<8x1xf32>
      %cst_28 = arith.constant 3.125000e-02 : f32
      %40 = vector.broadcast %cst_28 : f32 to vector<8x1xf32>
      %41 = arith.mulf %39, %40 : vector<8x1xf32>
      %cst_29 = arith.constant 9.99999974E-6 : f32
      %42 = vector.broadcast %cst_29 : f32 to vector<8x1xf32>
      %43 = arith.addf %41, %42 : vector<8x1xf32>
      %44 = math.rsqrt %43 : vector<8x1xf32>
      %45 = vector.broadcast %44 : vector<8x1xf32> to vector<8x128xf32>
      %46 = arith.mulf %31, %45 : vector<8x128xf32>
      %47 = vector.broadcast %20 : vector<1x128xf32> to vector<8x128xf32>
      %48 = arith.mulf %46, %47 : vector<8x128xf32>
      %49 = vector.broadcast %21 : vector<1x128xf32> to vector<8x128xf32>
      %50 = arith.addf %48, %49 : vector<8x128xf32>
      %c0_30 = arith.constant 0 : index
      %c0_31 = arith.constant 0 : index
      %51 = vector.load %arg9[%c0_30, %c0_31] : memref<8x128xf32, #tpu.memory_space<vmem>>, vector<8x128xf32>
      tpu.vector_store %arg9[%c0_30, %c0_31], %50 {strides = array<i32>} : memref<8x128xf32, #tpu.memory_space<vmem>>, vector<8x128xf32>,
    } else {
    }
    return
  }
  func.func @transform_0(%arg0: i32, %arg1: i32) -> (i32, i32) {
    %c0_i32 = arith.constant 0 : i32
    %c0_i32_0 = arith.constant 0 : i32
    return %arg0, %c0_i32 : i32, i32
  }
  func.func @transform_1(%arg0: i32, %arg1: i32) -> (i32, i32) {
    %c0_i32 = arith.constant 0 : i32
    %c0_i32_0 = arith.constant 0 : i32
    return %c0_i32, %arg1 : i32, i32
  }
  func.func @transform_2(%arg0: i32, %arg1: i32) -> (i32, i32) {
    %c0_i32 = arith.constant 0 : i32
    %c0_i32_0 = arith.constant 0 : i32
    return %c0_i32, %arg1 : i32, i32
  }
  func.func @transform_3(%arg0: i32, %arg1: i32) -> (i32, i32) {
    %c0_i32 = arith.constant 0 : i32
    %c0_i32_0 = arith.constant 0 : i32
    return %arg1, %c0_i32 : i32, i32
  }
  func.func @transform_4(%arg0: i32, %arg1: i32) -> (i32, i32) {
    %c0_i32 = arith.constant 0 : i32
    %c0_i32_0 = arith.constant 0 : i32
    %c0_i32_1 = arith.constant 0 : i32
    return %c0_i32, %c0_i32_0 : i32, i32
  }
  func.func @transform_5(%arg0: i32, %arg1: i32) -> (i32, i32) {
    %c0_i32 = arith.constant 0 : i32
    %c0_i32_0 = arith.constant 0 : i32
    %c0_i32_1 = arith.constant 0 : i32
    return %c0_i32, %c0_i32_0 : i32, i32
  }
  func.func @transform_6(%arg0: i32, %arg1: i32) -> (i32, i32) {
    %c0_i32 = arith.constant 0 : i32
    %c0_i32_0 = arith.constant 0 : i32
    %c0_i32_1 = arith.constant 0 : i32
    return %c0_i32, %c0_i32_0 : i32, i32
  }
  func.func @transform_7(%arg0: i32, %arg1: i32) -> (i32, i32) {
    %c0_i32 = arith.constant 0 : i32
    %c0_i32_0 = arith.constant 0 : i32
    return %arg0, %c0_i32 : i32, i32
  }
}

</mosaic_0001>

<llo_original>
// kernel: tpu_custom_call.1
$region0: #{tpu_custom_call.1}
  #allocation0 [shape = 'u32[]', space=smem, size = 0x4, offset = 0x4, fixed_abs, tag = 'smem constant byte address 0x4 - core index']
  #allocation1 [shape = 'u32[144,128]{1,0:T(1,128)}', space=vmem, size = 0x12000, scoped, tag = 'internal scratch']
  #allocation2 [shape = 'f32[8,128]{1,0:T(8,128)}', space=vmem, size = 0x1000, scoped, tag = 'scratch operand']
  %s0 = inlined_call_operand.hbm [shape: f32[16,128], index: 0, kind: input, shape index: {}]
  %s1 = inlined_call_operand.hbm [shape: f32[128,128], index: 1, kind: input, shape index: {}]
  %s2 = inlined_call_operand.vmem [shape: f32[1,128], index: 2, kind: input, shape index: {}]
  %s3 = inlined_call_operand.hbm [shape: f32[128,128], index: 3, kind: input, shape index: {}]
  %s4 = inlined_call_operand.vmem [shape: f32[1,128], index: 4, kind: input, shape index: {}]
  %s5 = inlined_call_operand.vmem [shape: f32[1,128], index: 5, kind: input, shape index: {}]
  %s6 = inlined_call_operand.vmem [shape: f32[1,128], index: 6, kind: input, shape index: {}]
  %s7 = inlined_call_operand.hbm [shape: f32[16,128], index: 7, kind: output, shape index: {}]
  %s8 = sld [smem:[#allocation0]]
  $region81: #{tpu_custom_call.1} parent=0
    _
  %s10 = ssub.s32 1, %s8
  %s11 = scalar_select 0, %s10, %s8
  $region1: #{tpu_custom_call.1} parent=0
    #allocation3 [shape = 'u8[8192]{0}', space=vmem, size = 0x2000, scoped, tag = 'input window, operand 0']
    #allocation4 [shape = 's32[2]{0}', space=sflag, size = 0x8, scoped, tag = 'scoped memory for tpu_custom_call.1']
    #allocation5 [shape = 's32[2]{0}', space=sflag, size = 0x8, scoped, tag = 'scoped memory for tpu_custom_call.1']
    #allocation6 [shape = 'u8[65536]{0}', space=vmem, size = 0x10000, scoped, tag = 'input window, operand 1, single buffered']
    #allocation7 [shape = 's32[1]{0}', space=sflag, size = 0x4, scoped, tag = 'scoped memory for tpu_custom_call.1']
    #allocation8 [shape = 'u8[65536]{0}', space=vmem, size = 0x10000, scoped, tag = 'input window, operand 3, single buffered']
    #allocation9 [shape = 'u8[8192]{0}', space=vmem, size = 0x2000, scoped, tag = 'output window, operand 0']
    %12 = vsyncpa [#allocation4], 0
    %s13 = scalar_lea.sflag [#allocation4], 1
    %14 = vsyncpa %s13, 0
    %15 = vsyncpa [#allocation7], 0
    %16 = vsyncpa [#allocation5], 0
    %s17 = scalar_lea.sflag [#allocation5], 1
    %18 = vsyncpa %s17, 0
    loop: start=0, step=1, limit=4
    $region2: #{tpu_custom_call.1} parent=1 // loop_pre_header
      _
    $region3: #{tpu_custom_call.1} parent=1 // loop_header
      %s20 = sphi 0, %s24
      %p21 = scmp.ge.s32.totalorder %s20, 4
      %s27 = sphi 0, %s39
      %s28 = sphi 0, %s35
      %s29 = sphi 0, %s27
      %s30 = sphi 0, %s28
      %s31 = sphi 0, %s29
      %s32 = sphi 0, %s30
      %s42 = sphi 0, %s44
      %s45 = sphi 0, %s42
      %s46 = sphi 0, %s45
      %s62 = sphi 0, %s46
      %s68 = sphi 0, %s70
      %s71 = sphi 0, %s68
      %s72 = sphi 0, %s71
      %s88 = sphi 0, %s72
      %s94 = sphi 0, %s96
      %s97 = sphi 0, %s94
      %s98 = sphi 0, %s97
      %s114 = sphi 0, %s98
      %s120 = sphi 0, %s122
      %s123 = sphi 0, %s120
      %s124 = sphi 0, %s123
      %s140 = sphi 0, %s124
      %s144 = sphi 0, %s144
      %s146 = sphi 0, %s144
      %s147 = sphi 0, %s146
      %s161 = sphi 0, %s147
      %s165 = sphi 0, %s165
      %s167 = sphi 0, %s165
      %s168 = sphi 0, %s167
      %s182 = sphi 0, %s168
      %s186 = sphi 0, %s186
      %s188 = sphi 0, %s186
      %s189 = sphi 0, %s188
      %s203 = sphi 0, %s189
      %s209 = sphi 0, %s211
      %s212 = sphi 0, %s209
      %s213 = sphi 0, %s212
      %s229 = sphi 0, %s213
    $region4: #{tpu_custom_call.1} parent=1 // loop_header_branch
      %23 = sbr.rel (%p21) target = $region8
    $region5: #{tpu_custom_call.1} parent=1 // loop_body
      %s25 = ssub.s32 %s20, 1
      %s26 = ssub.s32 %s20, 2
      %s33 = sadd.s32 1, %s28
      %p34 = scmp.ge.s32.totalorder %s33, 1
      %s35 = scalar_select %p34, 0, %s33
      %s36 = sadd.s32 1, %s27
      %s37 = scalar_select %p34, %s36, %s27
      %p38 = scmp.ge.s32.totalorder %s37, 2
      %s39 = scalar_select %p38, 0, %s37
      %s40 = ssub.s32 %s27, %s39
      %p41 = scmp.eq.s32.totalorder %s40, 0
      %s43 = sadd.s32 %s42, 1
      %s44 = scalar_select %p41, %s42, %s43
      %p47 = pneg %p41
      %p48 = scmp.eq.s32.totalorder %s20, 1
      %p49 = por %p47, %p48
      %p50 = scmp.ne.s32.totalorder %s42, %s45
      %p51 = scmp.eq.s32.totalorder %s20, 0
      %p52 = por %p50, %p51
      %p53 = scmp.ne.s32.totalorder %s42, %s45
      %p54 = scmp.eq.s32.totalorder %s25, 1
      %p55 = por %p53, %p54
      %p56 = scmp.ne.s32.totalorder %s45, %s46
      %p57 = scmp.eq.s32.totalorder %s25, 0
      %p58 = por %p56, %p57
      %p59 = scmp.ne.s32.totalorder %s45, %s46
      %p60 = scmp.eq.s32.totalorder %s26, 1
      %p61 = por %p59, %p60
      %p63 = scmp.ne.s32.totalorder %s46, %s62
      %p64 = scmp.eq.s32.totalorder %s26, 0
      %p65 = por %p63, %p64
      %s66 = ssub.s32 %s28, %s35
      %p67 = scmp.eq.s32.totalorder %s66, 0
      %s69 = sadd.s32 %s68, 1
      %s70 = scalar_select %p67, %s68, %s69
      %p73 = pneg %p67
      %p74 = scmp.eq.s32.totalorder %s20, 1
      %p75 = por %p73, %p74
      %p76 = scmp.ne.s32.totalorder %s68, %s71
      %p77 = scmp.eq.s32.totalorder %s20, 0
      %p78 = por %p76, %p77
      %p79 = scmp.ne.s32.totalorder %s68, %s71
      %p80 = scmp.eq.s32.totalorder %s25, 1
      %p81 = por %p79, %p80
      %p82 = scmp.ne.s32.totalorder %s71, %s72
      %p83 = scmp.eq.s32.totalorder %s25, 0
      %p84 = por %p82, %p83
      %p85 = scmp.ne.s32.totalorder %s71, %s72
      %p86 = scmp.eq.s32.totalorder %s26, 1
      %p87 = por %p85, %p86
      %p89 = scmp.ne.s32.totalorder %s72, %s88
      %p90 = scmp.eq.s32.totalorder %s26, 0
      %p91 = por %p89, %p90
      %s92 = ssub.s32 %s28, %s35
      %p93 = scmp.eq.s32.totalorder %s92, 0
      %s95 = sadd.s32 %s94, 1
      %s96 = scalar_select %p93, %s94, %s95
      %p99 = pneg %p93
      %p100 = scmp.eq.s32.totalorder %s20, 1
      %p101 = por %p99, %p100
      %p102 = scmp.ne.s32.totalorder %s94, %s97
      %p103 = scmp.eq.s32.totalorder %s20, 0
      %p104 = por %p102, %p103
      %p105 = scmp.ne.s32.totalorder %s94, %s97
      %p106 = scmp.eq.s32.totalorder %s25, 1
      %p107 = por %p105, %p106
      %p108 = scmp.ne.s32.totalorder %s97, %s98
      %p109 = scmp.eq.s32.totalorder %s25, 0
      %p110 = por %p108, %p109
      %p111 = scmp.ne.s32.totalorder %s97, %s98
      %p112 = scmp.eq.s32.totalorder %s26, 1
      %p113 = por %p111, %p112
      %p115 = scmp.ne.s32.totalorder %s98, %s114
      %p116 = scmp.eq.s32.totalorder %s26, 0
      %p117 = por %p115, %p116
      %s118 = ssub.s32 %s28, %s35
      %p119 = scmp.eq.s32.totalorder %s118, 0
      %s121 = sadd.s32 %s120, 1
      %s122 = scalar_select %p119, %s120, %s121
      %p125 = pneg %p119
      %p126 = scmp.eq.s32.totalorder %s20, 1
      %p127 = por %p125, %p126
      %p128 = scmp.ne.s32.totalorder %s120, %s123
      %p129 = scmp.eq.s32.totalorder %s20, 0
      %p130 = por %p128, %p129
      %p131 = scmp.ne.s32.totalorder %s120, %s123
      %p132 = scmp.eq.s32.totalorder %s25, 1
      %p133 = por %p131, %p132
      %p134 = scmp.ne.s32.totalorder %s123, %s124
      %p135 = scmp.eq.s32.totalorder %s25, 0
      %p136 = por %p134, %p135
      %p137 = scmp.ne.s32.totalorder %s123, %s124
      %p138 = scmp.eq.s32.totalorder %s26, 1
      %p139 = por %p137, %p138
      %p141 = scmp.ne.s32.totalorder %s124, %s140
      %p142 = scmp.eq.s32.totalorder %s26, 0
      %p143 = por %p141, %p142
      %s145 = sadd.s32 %s144, 1
      %p148 = scmp.eq.s32.totalorder %s20, 1
      %p149 = scmp.ne.s32.totalorder %s144, %s146
      %p150 = scmp.eq.s32.totalorder %s20, 0
      %p151 = por %p149, %p150
      %p152 = scmp.ne.s32.totalorder %s144, %s146
      %p153 = scmp.eq.s32.totalorder %s25, 1
      %p154 = por %p152, %p153
      %p155 = scmp.ne.s32.totalorder %s146, %s147
      %p156 = scmp.eq.s32.totalorder %s25, 0
      %p157 = por %p155, %p156
      %p158 = scmp.ne.s32.totalorder %s146, %s147
      %p159 = scmp.eq.s32.totalorder %s26, 1
      %p160 = por %p158, %p159
      %p162 = scmp.ne.s32.totalorder %s147, %s161
      %p163 = scmp.eq.s32.totalorder %s26, 0
      %p164 = por %p162, %p163
      %s166 = sadd.s32 %s165, 1
      %p169 = scmp.eq.s32.totalorder %s20, 1
      %p170 = scmp.ne.s32.totalorder %s165, %s167
      %p171 = scmp.eq.s32.totalorder %s20, 0
      %p172 = por %p170, %p171
      %p173 = scmp.ne.s32.totalorder %s165, %s167
      %p174 = scmp.eq.s32.totalorder %s25, 1
      %p175 = por %p173, %p174
      %p176 = scmp.ne.s32.totalorder %s167, %s168
      %p177 = scmp.eq.s32.totalorder %s25, 0
      %p178 = por %p176, %p177
      %p179 = scmp.ne.s32.totalorder %s167, %s168
      %p180 = scmp.eq.s32.totalorder %s26, 1
      %p181 = por %p179, %p180
      %p183 = scmp.ne.s32.totalorder %s168, %s182
      %p184 = scmp.eq.s32.totalorder %s26, 0
      %p185 = por %p183, %p184
      %s187 = sadd.s32 %s186, 1
      %p190 = scmp.eq.s32.totalorder %s20, 1
      %p191 = scmp.ne.s32.totalorder %s186, %s188
      %p192 = scmp.eq.s32.totalorder %s20, 0
      %p193 = por %p191, %p192
      %p194 = scmp.ne.s32.totalorder %s186, %s188
      %p195 = scmp.eq.s32.totalorder %s25, 1
      %p196 = por %p194, %p195
      %p197 = scmp.ne.s32.totalorder %s188, %s189
      %p198 = scmp.eq.s32.totalorder %s25, 0
      %p199 = por %p197, %p198
      %p200 = scmp.ne.s32.totalorder %s188, %s189
      %p201 = scmp.eq.s32.totalorder %s26, 1
      %p202 = por %p200, %p201
      %p204 = scmp.ne.s32.totalorder %s189, %s203
      %p205 = scmp.eq.s32.totalorder %s26, 0
      %p206 = por %p204, %p205
      %s207 = ssub.s32 %s27, %s39
      %p208 = scmp.eq.s32.totalorder %s207, 0
      %s210 = sadd.s32 %s209, 1
      %s211 = scalar_select %p208, %s209, %s210
      %p214 = pneg %p208
      %p215 = scmp.eq.s32.totalorder %s20, 1
      %p216 = por %p214, %p215
      %p217 = scmp.ne.s32.totalorder %s209, %s212
      %p218 = scmp.eq.s32.totalorder %s20, 0
      %p219 = por %p217, %p218
      %p220 = scmp.ne.s32.totalorder %s209, %s212
      %p221 = scmp.eq.s32.totalorder %s25, 1
      %p222 = por %p220, %p221
      %p223 = scmp.ne.s32.totalorder %s212, %s213
      %p224 = scmp.eq.s32.totalorder %s25, 0
      %p225 = por %p223, %p224
      %p226 = scmp.ne.s32.totalorder %s212, %s213
      %p227 = scmp.eq.s32.totalorder %s26, 1
      %p228 = por %p226, %p227
      %p230 = scmp.ne.s32.totalorder %s213, %s229
      %p231 = scmp.eq.s32.totalorder %s26, 0
      %p232 = por %p230, %p231
      %p233 = scmp.le.s32.totalorder 1, %s20
      %p234 = scmp.lt.s32.totalorder %s20, 3
      %p235 = pnand %p233, %p234
      %p236 = pneg %p235
      // Predicated region
      $region9: #{tpu_custom_call.1} parent=5 // pred_check
        _
      $region10: #{tpu_custom_call.1} parent=5 // pred_check_branch
        %238 = sbr.rel (%p235) target = $region12
      $region11: #{tpu_custom_call.1} parent=5 // pred_region
        %s239 = ssub.s32 %s20, 1
        // Predicated region
        $region13: #{tpu_custom_call.1} parent=11 // pred_check
          %p240 = pneg %p84
        $region14: #{tpu_custom_call.1} parent=11 // pred_check_branch
          %242 = sbr.rel (%p240) target = $region16
        $region15: #{tpu_custom_call.1} parent=11 // pred_region
          %s244 = ssub.s32 2048, 2048
          %245 = vsyncadd [#allocation7], %s244
          %s246 = smul.addr %s30, 128
          %s247 = scalar_lea.hbm %s1, %s246
          %s248 = sshll.u32 [#allocation6], 4
          %s249 = int_to_ptr.vmem [resolvable:$true] %s248
          %254 = dma.hbm_to_vmem [thread:$0]  %s247, 2048, %s249, [#allocation7], 128, 128, 8
        $region16: #{tpu_custom_call.1} parent=11 // pred_fallthru
          _
        // Predicated region
        $region17: #{tpu_custom_call.1} parent=11 // pred_check
          %p255 = pneg %p110
        $region18: #{tpu_custom_call.1} parent=11 // pred_check_branch
          %257 = sbr.rel (%p255) target = $region20
        $region19: #{tpu_custom_call.1} parent=11 // pred_region
          %p258 = scmp.lt.s32.totalorder %s30, 0
          %s259 = scalar_select %p258, %s30, 0
          %s260 = scalar_lea.vmem %s2, %s259
        $region20: #{tpu_custom_call.1} parent=11 // pred_fallthru
          _
        // Predicated region
        $region21: #{tpu_custom_call.1} parent=11 // pred_check
          %p261 = pneg %p136
        $region22: #{tpu_custom_call.1} parent=11 // pred_check_branch
          %263 = sbr.rel (%p261) target = $region24
        $region23: #{tpu_custom_call.1} parent=11 // pred_region
          %s264 = smul.u32 16, %s30
          %s266 = ssub.s32 2048, 2048
          %267 = vsyncadd [#allocation7], %s266
          %s268 = smul.addr %s264, 128
          %s269 = scalar_lea.hbm %s3, %s268
          %s270 = sshll.u32 [#allocation8], 4
          %s271 = int_to_ptr.vmem [resolvable:$true] %s270
          %276 = dma.hbm_to_vmem [thread:$0]  %s269, 2048, %s271, [#allocation7], 128, 128, 8
        $region24: #{tpu_custom_call.1} parent=11 // pred_fallthru
          _
        // Predicated region
        $region25: #{tpu_custom_call.1} parent=11 // pred_check
          %p277 = pneg %p157
        $region26: #{tpu_custom_call.1} parent=11 // pred_check_branch
          %279 = sbr.rel (%p277) target = $region28
        $region27: #{tpu_custom_call.1} parent=11 // pred_region
          _
        $region28: #{tpu_custom_call.1} parent=11 // pred_fallthru
          _
        // Predicated region
        $region29: #{tpu_custom_call.1} parent=11 // pred_check
          %p280 = pneg %p178
        $region30: #{tpu_custom_call.1} parent=11 // pred_check_branch
          %282 = sbr.rel (%p280) target = $region32
        $region31: #{tpu_custom_call.1} parent=11 // pred_region
          _
        $region32: #{tpu_custom_call.1} parent=11 // pred_fallthru
          _
        // Predicated region
        $region33: #{tpu_custom_call.1} parent=11 // pred_check
          %p283 = pneg %p199
        $region34: #{tpu_custom_call.1} parent=11 // pred_check_branch
          %285 = sbr.rel (%p283) target = $region36
        $region35: #{tpu_custom_call.1} parent=11 // pred_region
          _
        $region36: #{tpu_custom_call.1} parent=11 // pred_fallthru
          _
      $region12: #{tpu_custom_call.1} parent=5 // pred_fallthru
        _
      %p286 = scmp.lt.s32.totalorder %s20, 2
      // Predicated region
      $region37: #{tpu_custom_call.1} parent=5 // pred_check
        %p287 = pneg %p286
      $region38: #{tpu_custom_call.1} parent=5 // pred_check_branch
        %289 = sbr.rel (%p287) target = $region40
      $region39: #{tpu_custom_call.1} parent=5 // pred_region
        // Predicated region
        $region41: #{tpu_custom_call.1} parent=39 // pred_check
          %p290 = pneg %p52
        $region42: #{tpu_custom_call.1} parent=39 // pred_check_branch
          %292 = sbr.rel (%p290) target = $region44
        $region43: #{tpu_custom_call.1} parent=39 // pred_region
          %s293 = sand.u32 %s42, 1
          %s294 = scalar_lea.sflag [#allocation4], %s293
          %s295 = sand.u32 %s42, 1
          %s296 = smul.addr %s295, 8
          %s297 = scalar_lea.vmem [#allocation3], %s296
          %s299 = ssub.s32 128, 128
          %300 = vsyncadd %s294, %s299
          %s301 = smul.addr %s27, 128
          %s302 = scalar_lea.hbm %s0, %s301
          %s304 = sshll.u32 %s297, 4
          %s305 = int_to_ptr.vmem [resolvable:$true] %s304
          %307 = dma.hbm_to_vmem [thread:$0]  %s302, 128, %s305, %s294
        $region44: #{tpu_custom_call.1} parent=39 // pred_fallthru
          _
      $region40: #{tpu_custom_call.1} parent=5 // pred_fallthru
        _
      %p308 = scmp.le.s32.totalorder 1, %s20
      %p309 = scmp.lt.s32.totalorder %s20, 3
      %p310 = pnand %p308, %p309
      %p311 = pneg %p310
      // Predicated region
      $region45: #{tpu_custom_call.1} parent=5 // pred_check
        _
      $region46: #{tpu_custom_call.1} parent=5 // pred_check_branch
        %313 = sbr.rel (%p310) target = $region48
      $region47: #{tpu_custom_call.1} parent=5 // pred_region
        %s314 = ssub.s32 %s20, 1
        %s315 = sand.u32 %s45, 1
        %s316 = scalar_lea.sflag [#allocation4], %s315
        %s317 = sand.u32 %s45, 1
        %s318 = smul.addr %s317, 8
        %s319 = scalar_lea.vmem [#allocation3], %s318
        // Predicated region
        $region49: #{tpu_custom_call.1} parent=47 // pred_check
          %p320 = pneg %p58
        $region50: #{tpu_custom_call.1} parent=47 // pred_check_branch
          %322 = sbr.rel (%p320) target = $region52
        $region51: #{tpu_custom_call.1} parent=47 // pred_region
          %323 = dma.done %s316, 128
        $region52: #{tpu_custom_call.1} parent=47 // pred_fallthru
          _
        // Predicated region
        $region53: #{tpu_custom_call.1} parent=47 // pred_check
          %p324 = pneg %p84
        $region54: #{tpu_custom_call.1} parent=47 // pred_check_branch
          %326 = sbr.rel (%p324) target = $region56
        $region55: #{tpu_custom_call.1} parent=47 // pred_region
          %327 = dma.done [#allocation7], 2048
        $region56: #{tpu_custom_call.1} parent=47 // pred_fallthru
          _
        // Predicated region
        $region57: #{tpu_custom_call.1} parent=47 // pred_check
          %p328 = pneg %p136
        $region58: #{tpu_custom_call.1} parent=47 // pred_check_branch
          %330 = sbr.rel (%p328) target = $region60
        $region59: #{tpu_custom_call.1} parent=47 // pred_region
          %331 = dma.done [#allocation7], 2048
        $region60: #{tpu_custom_call.1} parent=47 // pred_fallthru
          _
        %s332 = sand.u32 %s45, 1
        %s333 = scalar_lea.sflag [#allocation4], %s332
        %s334 = sand.u32 %s45, 1
        %s335 = smul.addr %s334, 8
        %s336 = scalar_lea.vmem [#allocation3], %s335
        %p337 = pneg %p58
        %p338 = pneg %p55
        %p339 = pneg %p84
        %p340 = pneg %p81
        %p341 = scmp.lt.s32.totalorder %s30, 0
        %s342 = scalar_select %p341, %s30, 0
        %s343 = scalar_lea.vmem %s2, %s342
        %p344 = pneg %p110
        %p345 = pneg %p107
        %p346 = pneg %p136
        %p347 = pneg %p133
        %p348 = pneg %p157
        %p349 = pneg %p154
        %p350 = pneg %p178
        %p351 = pneg %p175
        %p352 = pneg %p199
        %p353 = pneg %p196
        %p354 = pneg %p225
        %p355 = pneg %p222
        %s356 = sand.u32 %s212, 1
        %s357 = scalar_lea.sflag [#allocation5], %s356
        %s358 = sand.u32 %s212, 1
        %s359 = smul.addr %s358, 8
        %s360 = scalar_lea.vmem [#allocation9], %s359
        %p361 = scmp.lt.s32.totalorder %s30, 0
        %s362 = scalar_select %p361, %s30, 0
        %s363 = scalar_lea.vmem %s2, %s362
        %s364 = smul.u32 16, %s30
        %p365 = scmp.eq.s32.totalorder %s30, 0
        // Predicated region
        $region61: #{tpu_custom_call.1} parent=47 // pred_check
          %p366 = pneg %p365
        $region62: #{tpu_custom_call.1} parent=47 // pred_check_branch
          %368 = sbr.rel (%p366) target = $region64
        $region63: #{tpu_custom_call.1} parent=47 // pred_region
          %369 = vst [vmem:[#allocation2] sm:$0xff] 0.0
        $region64: #{tpu_custom_call.1} parent=47 // pred_fallthru
          _
        %v370 = vld [vmem:[#allocation6] sm:$0xff]
        %v371 = vld [vmem:[#allocation6 + $0x8] sm:$0xff]
        %v372 = vld [vmem:[#allocation6 + $0x10] sm:$0xff]
        %v373 = vld [vmem:[#allocation6 + $0x18] sm:$0xff]
        %v374 = vld [vmem:[#allocation6 + $0x20] sm:$0xff]
        %v375 = vld [vmem:[#allocation6 + $0x28] sm:$0xff]
        %v376 = vld [vmem:[#allocation6 + $0x30] sm:$0xff]
        %v377 = vld [vmem:[#allocation6 + $0x38] sm:$0xff]
        %v378 = vld [vmem:[#allocation6 + $0x40] sm:$0xff]
        %v379 = vld [vmem:[#allocation6 + $0x48] sm:$0xff]
        %v380 = vld [vmem:[#allocation6 + $0x50] sm:$0xff]
        %v381 = vld [vmem:[#allocation6 + $0x58] sm:$0xff]
        %v382 = vld [vmem:[#allocation6 + $0x60] sm:$0xff]
        %v383 = vld [vmem:[#allocation6 + $0x68] sm:$0xff]
        %v384 = vld [vmem:[#allocation6 + $0x70] sm:$0xff]
        %v385 = vld [vmem:[#allocation6 + $0x78] sm:$0xff]
        %v386 = vld [vmem:[#allocation8] sm:$0xff]
        %v387 = vld [vmem:[#allocation8 + $0x8] sm:$0xff]
        %v388 = vld [vmem:[#allocation8 + $0x10] sm:$0xff]
        %v389 = vld [vmem:[#allocation8 + $0x18] sm:$0xff]
        %v390 = vld [vmem:[#allocation8 + $0x20] sm:$0xff]
        %v391 = vld [vmem:[#allocation8 + $0x28] sm:$0xff]
        %v392 = vld [vmem:[#allocation8 + $0x30] sm:$0xff]
        %v393 = vld [vmem:[#allocation8 + $0x38] sm:$0xff]
        %v394 = vld [vmem:[#allocation8 + $0x40] sm:$0xff]
        %v395 = vld [vmem:[#allocation8 + $0x48] sm:$0xff]
        %v396 = vld [vmem:[#allocation8 + $0x50] sm:$0xff]
        %v397 = vld [vmem:[#allocation8 + $0x58] sm:$0xff]
        %v398 = vld [vmem:[#allocation8 + $0x60] sm:$0xff]
        %v399 = vld [vmem:[#allocation8 + $0x68] sm:$0xff]
        %v400 = vld [vmem:[#allocation8 + $0x70] sm:$0xff]
        %v401 = vld [vmem:[#allocation8 + $0x78] sm:$0xff]
        %v402 = vld [vmem:[%s319] sm:$0xff]
        %v403 = vld [vmem:[%s363] sm:$0x1]
        %v405 = vlaneseq
        %v406 = vshrl.u32 %v405, 7
        %v407 = vsub.s32 0, %v406
        %v408 = vrot.slane %v403, %v407
        %410 = vmatprep.subr.mxu0 0.0
        %411 = vmatpush1.msra.mxu0 %v385
        %412 = vmatprep.subr.mxu0 0.0
        %413 = vmatpush1.msra.mxu0 %v384
        %414 = vmatprep.subr.mxu0 0.0
        %415 = vmatpush1.msra.mxu0 %v383
        %416 = vmatprep.subr.mxu0 0.0
        %417 = vmatpush1.msra.mxu0 %v382
        %418 = vmatprep.subr.mxu0 0.0
        %419 = vmatpush1.msra.mxu0 %v381
        %420 = vmatprep.subr.mxu0 0.0
        %421 = vmatpush1.msra.mxu0 %v380
        %422 = vmatprep.subr.mxu0 0.0
        %423 = vmatpush1.msra.mxu0 %v379
        %424 = vmatprep.subr.mxu0 0.0
        %425 = vmatpush1.msra.mxu0 %v378
        %426 = vmatprep.subr.mxu0 0.0
        %427 = vmatpush1.msra.mxu0 %v377
        %428 = vmatprep.subr.mxu0 0.0
        %429 = vmatpush1.msra.mxu0 %v376
        %430 = vmatprep.subr.mxu0 0.0
        %431 = vmatpush1.msra.mxu0 %v375
        %432 = vmatprep.subr.mxu0 0.0
        %433 = vmatpush1.msra.mxu0 %v374
        %434 = vmatprep.subr.mxu0 0.0
        %435 = vmatpush1.msra.mxu0 %v373
        %436 = vmatprep.subr.mxu0 0.0
        %437 = vmatpush1.msra.mxu0 %v372
        %438 = vmatprep.subr.mxu0 0.0
        %439 = vmatpush1.msra.mxu0 %v371
        %440 = vmatprep.subr.mxu0 0.0
        %441 = vmatpush1.msra.mxu0 %v370
        %442 = vmatprep.subr.mxu0 0.0
        %443 = vmatpush2.msra.mxu0 0.0
        %444 = vmatprep.subr.mxu0 0.0
        %445 = vmatpush2.msra.mxu0 0.0
        %446 = vmatprep.subr.mxu0 0.0
        %447 = vmatpush2.msra.mxu0 0.0
        %448 = vmatprep.subr.mxu0 0.0
        %449 = vmatpush2.msra.mxu0 0.0
        %450 = vmatprep.subr.mxu0 0.0
        %451 = vmatpush2.msra.mxu0 0.0
        %452 = vmatprep.subr.mxu0 0.0
        %453 = vmatpush2.msra.mxu0 0.0
        %454 = vmatprep.subr.mxu0 0.0
        %455 = vmatpush2.msra.mxu0 0.0
        %456 = vmatprep.subr.mxu0 0.0
        %457 = vmatpush2.msra.mxu0 0.0
        %458 = vmatprep.subr.mxu0 0.0
        %459 = vmatpush2.msra.mxu0 0.0
        %460 = vmatprep.subr.mxu0 0.0
        %461 = vmatpush2.msra.mxu0 0.0
        %462 = vmatprep.subr.mxu0 0.0
        %463 = vmatpush2.msra.mxu0 0.0
        %464 = vmatprep.subr.mxu0 0.0
        %465 = vmatpush2.msra.mxu0 0.0
        %466 = vmatprep.subr.mxu0 0.0
        %467 = vmatpush2.msra.mxu0 0.0
        %468 = vmatprep.subr.mxu0 0.0
        %469 = vmatpush2.msra.mxu0 0.0
        %470 = vmatprep.subr.mxu0 0.0
        %471 = vmatpush2.msra.mxu0 0.0
        %472 = vmatprep.subr.mxu0 0.0
        %473 = vmatpush2.msra.mxu0 0.0
        %474 = vmatprep.mubr.f32.mxu0 0.0
        %475 = vmatmul.mubr.f32.gmra.mxu0 %v402
        %v476 = vpop.f32.mrf.mxu0
        %v477 = vadd.f32 %v408, %v476
        %v478 = vpop.f32.mrf.mxu0
        %479 = vdwg.mxu0
        %v480 = vmax.f32 %v477, 0.0
        %v481 = vld [vmem:[#allocation2] sm:$0xff]
        %482 = vmatprep.subr.mxu0 0.0
        %483 = vmatpush1.msra.mxu0 %v401
        %484 = vmatprep.subr.mxu0 0.0
        %485 = vmatpush1.msra.mxu0 %v400
        %486 = vmatprep.subr.mxu0 0.0
        %487 = vmatpush1.msra.mxu0 %v399
        %488 = vmatprep.subr.mxu0 0.0
        %489 = vmatpush1.msra.mxu0 %v398
        %490 = vmatprep.subr.mxu0 0.0
        %491 = vmatpush1.msra.mxu0 %v397
        %492 = vmatprep.subr.mxu0 0.0
        %493 = vmatpush1.msra.mxu0 %v396
        %494 = vmatprep.subr.mxu0 0.0
        %495 = vmatpush1.msra.mxu0 %v395
        %496 = vmatprep.subr.mxu0 0.0
        %497 = vmatpush1.msra.mxu0 %v394
        %498 = vmatprep.subr.mxu0 0.0
        %499 = vmatpush1.msra.mxu0 %v393
        %500 = vmatprep.subr.mxu0 0.0
        %501 = vmatpush1.msra.mxu0 %v392
        %502 = vmatprep.subr.mxu0 0.0
        %503 = vmatpush1.msra.mxu0 %v391
        %504 = vmatprep.subr.mxu0 0.0
        %505 = vmatpush1.msra.mxu0 %v390
        %506 = vmatprep.subr.mxu0 0.0
        %507 = vmatpush1.msra.mxu0 %v389
        %508 = vmatprep.subr.mxu0 0.0
        %509 = vmatpush1.msra.mxu0 %v388
        %510 = vmatprep.subr.mxu0 0.0
        %511 = vmatpush1.msra.mxu0 %v387
        %512 = vmatprep.subr.mxu0 0.0
        %513 = vmatpush1.msra.mxu0 %v386
        %514 = vmatprep.subr.mxu0 0.0
        %515 = vmatpush2.msra.mxu0 0.0
        %516 = vmatprep.subr.mxu0 0.0
        %517 = vmatpush2.msra.mxu0 0.0
        %518 = vmatprep.subr.mxu0 0.0
        %519 = vmatpush2.msra.mxu0 0.0
        %520 = vmatprep.subr.mxu0 0.0
        %521 = vmatpush2.msra.mxu0 0.0
        %522 = vmatprep.subr.mxu0 0.0
        %523 = vmatpush2.msra.mxu0 0.0
        %524 = vmatprep.subr.mxu0 0.0
        %525 = vmatpush2.msra.mxu0 0.0
        %526 = vmatprep.subr.mxu0 0.0
        %527 = vmatpush2.msra.mxu0 0.0
        %528 = vmatprep.subr.mxu0 0.0
        %529 = vmatpush2.msra.mxu0 0.0
        %530 = vmatprep.subr.mxu0 0.0
        %531 = vmatpush2.msra.mxu0 0.0
        %532 = vmatprep.subr.mxu0 0.0
        %533 = vmatpush2.msra.mxu0 0.0
        %534 = vmatprep.subr.mxu0 0.0
        %535 = vmatpush2.msra.mxu0 0.0
        %536 = vmatprep.subr.mxu0 0.0
        %537 = vmatpush2.msra.mxu0 0.0
        %538 = vmatprep.subr.mxu0 0.0
        %539 = vmatpush2.msra.mxu0 0.0
        %540 = vmatprep.subr.mxu0 0.0
        %541 = vmatpush2.msra.mxu0 0.0
        %542 = vmatprep.subr.mxu0 0.0
        %543 = vmatpush2.msra.mxu0 0.0
        %544 = vmatprep.subr.mxu0 0.0
        %545 = vmatpush2.msra.mxu0 0.0
        %546 = vmatprep.mubr.f32.mxu0 0.0
        %547 = vmatmul.mubr.f32.gmra.mxu0 %v480
        %v548 = vpop.f32.mrf.mxu0
        %v549 = vadd.f32 0.0, %v548
        %v550 = vpop.f32.mrf.mxu0
        %551 = vdwg.mxu0
        %v552 = vadd.f32 %v481, %v549
        %553 = vst [vmem:[#allocation2] sm:$0xff] %v552
        // Predicated region
        $region65: #{tpu_custom_call.1} parent=47 // pred_check
          %p554 = pneg %p365
        $region66: #{tpu_custom_call.1} parent=47 // pred_check_branch
          %556 = sbr.rel (%p554) target = $region68
        $region67: #{tpu_custom_call.1} parent=47 // pred_region
          %v557 = vld [vmem:[%s4] sm:$0x1]
          %v558 = vld [vmem:[%s5] sm:$0x1]
          %v559 = vld [vmem:[%s6] sm:$0x1]
          %v560 = vld [vmem:[#allocation2] sm:$0xff]
          %v561 = vadd.f32 %v402, %v560
          %v563 = vlaneseq
          %v564 = vshrl.u32 %v563, 7
          %v565 = vsub.s32 0, %v564
          %v566 = vrot.slane %v557, %v565
          %v568 = vadd.f32 %v561, %v566
          %569 = vadd.xlane.f32.xlu0 %v568
          %v570 = vpop.xlane.xlu0 %569
          %v571 = vmul.f32 %v570, 0.03125
          %v572 = vsub.f32 %v568, %v571
          %v573 = vlaneseq
          %v574 = vand.u32 %v573, 127
          %vm575 = vcmp.lt.s32.totalorder %v574, 32
          %v576 = vsel %vm575, %v572, 0.0
          %v577 = vmul.f32 %v576, %v576
          %578 = vadd.xlane.f32.xlu0 %v577
          %v579 = vpop.xlane.xlu0 %578
          %v580 = vmul.f32 %v579, 0.03125
          %v581 = vadd.f32 %v580, 1e-05
          %v582 = vrsqrt.pop %v581
          %v583 = vmul.f32 %v572, %v582
          %v585 = vlaneseq
          %v586 = vshrl.u32 %v585, 7
          %v587 = vsub.s32 0, %v586
          %v588 = vrot.slane %v558, %v587
          %v590 = vmul.f32 %v583, %v588
          %v592 = vlaneseq
          %v593 = vshrl.u32 %v592, 7
          %v594 = vsub.s32 0, %v593
          %v595 = vrot.slane %v559, %v594
          %v597 = vadd.f32 %v590, %v595
          %598 = vst [vmem:[%s360] sm:$0xff] %v597
        $region68: #{tpu_custom_call.1} parent=47 // pred_fallthru
          _
        %s599 = sand.u32 %s212, 1
        %s600 = scalar_lea.sflag [#allocation5], %s599
        %s601 = sand.u32 %s212, 1
        %s602 = smul.addr %s601, 8
        %s603 = scalar_lea.vmem [#allocation9], %s602
        // Predicated region
        $region69: #{tpu_custom_call.1} parent=47 // pred_check
          %p604 = pneg %p222
        $region70: #{tpu_custom_call.1} parent=47 // pred_check_branch
          %606 = sbr.rel (%p604) target = $region72
        $region71: #{tpu_custom_call.1} parent=47 // pred_region
          %s608 = ssub.s32 128, 128
          %609 = vsyncadd %s600, %s608
          %s610 = smul.addr %s29, 128
          %s611 = scalar_lea.hbm %s7, %s610
          %s613 = sshll.u32 %s603, 4
          %s614 = int_to_ptr.vmem [resolvable:$true] %s613
          %616 = dma.vmem_to_hbm [thread:$0]  %s614, 128, %s611, %s600
        $region72: #{tpu_custom_call.1} parent=47 // pred_fallthru
          _
      $region48: #{tpu_custom_call.1} parent=5 // pred_fallthru
        _
      %p617 = scmp.le.s32.totalorder 2, %s20
      // Predicated region
      $region73: #{tpu_custom_call.1} parent=5 // pred_check
        %p618 = pneg %p617
      $region74: #{tpu_custom_call.1} parent=5 // pred_check_branch
        %620 = sbr.rel (%p618) target = $region76
      $region75: #{tpu_custom_call.1} parent=5 // pred_region
        %s621 = ssub.s32 %s20, 2
        // Predicated region
        $region77: #{tpu_custom_call.1} parent=75 // pred_check
          %p622 = pneg %p228
        $region78: #{tpu_custom_call.1} parent=75 // pred_check_branch
          %624 = sbr.rel (%p622) target = $region80
        $region79: #{tpu_custom_call.1} parent=75 // pred_region
          %s625 = sand.u32 %s213, 1
          %s626 = scalar_lea.sflag [#allocation5], %s625
          %s627 = sand.u32 %s213, 1
          %s628 = smul.addr %s627, 8
          %s629 = scalar_lea.vmem [#allocation9], %s628
          %630 = dma.done %s626, 128
        $region80: #{tpu_custom_call.1} parent=75 // pred_fallthru
          _
      $region76: #{tpu_custom_call.1} parent=5 // pred_fallthru
        _
    $region6: #{tpu_custom_call.1} parent=1 // loop_footer
      %s24 = sadd.s32 1, %s20
    $region7: #{tpu_custom_call.1} parent=1 // loop_footer_branch
      %19 = sbr.rel target = $region3
    $region8: #{tpu_custom_call.1} parent=1 // loop_exit
      _
    %631 = vsyncpa [#allocation4], 1
    %s632 = scalar_lea.sflag [#allocation4], 1
    %633 = vsyncpa %s632, 1
    %634 = vsyncpa [#allocation7], 1
    %635 = vsyncpa [#allocation5], 1
    %s636 = scalar_lea.sflag [#allocation5], 1
    %637 = vsyncpa %s636, 1

// kernel: tpu_custom_call.1
$region0: #{tpu_custom_call.1}
  #allocation0 [shape = 'u32[]', space=smem, size = 0x4, offset = 0x4, fixed_abs, tag = 'smem constant byte address 0x4 - core index']
  #allocation1 [shape = 'u32[144,128]{1,0:T(1,128)}', space=vmem, size = 0x12000, scoped, tag = 'internal scratch']
  #allocation2 [shape = 'f32[8,128]{1,0:T(8,128)}', space=vmem, size = 0x1000, scoped, tag = 'scratch operand']
  %s0 = inlined_call_operand.hbm [shape: f32[16,128], index: 0, kind: input, shape index: {}]
  %s1 = inlined_call_operand.hbm [shape: f32[128,128], index: 1, kind: input, shape index: {}]
  %s2 = inlined_call_operand.vmem [shape: f32[1,128], index: 2, kind: input, shape index: {}]
  %s3 = inlined_call_operand.hbm [shape: f32[128,128], index: 3, kind: input, shape index: {}]
  %s4 = inlined_call_operand.vmem [shape: f32[1,128], index: 4, kind: input, shape index: {}]
  %s5 = inlined_call_operand.vmem [shape: f32[1,128], index: 5, kind: input, shape index: {}]
  %s6 = inlined_call_operand.vmem [shape: f32[1,128], index: 6, kind: input, shape index: {}]
  %s7 = inlined_call_operand.hbm [shape: f32[16,128], index: 7, kind: output, shape index: {}]
  %s8 = sld [smem:[#allocation0]]
  $region81: #{tpu_custom_call.1} parent=0
    _
  %s10 = ssub.s32 1, %s8
  %s11 = scalar_select 0, %s10, %s8
  $region1: #{tpu_custom_call.1} parent=0
    #allocation3 [shape = 'u8[8192]{0}', space=vmem, size = 0x2000, scoped, tag = 'input window, operand 0']
    #allocation4 [shape = 's32[2]{0}', space=sflag, size = 0x8, scoped, tag = 'scoped memory for tpu_custom_call.1']
    #allocation5 [shape = 's32[2]{0}', space=sflag, size = 0x8, scoped, tag = 'scoped memory for tpu_custom_call.1']
    #allocation6 [shape = 'u8[65536]{0}', space=vmem, size = 0x10000, scoped, tag = 'input window, operand 1, single buffered']
    #allocation7 [shape = 's32[1]{0}', space=sflag, size = 0x4, scoped, tag = 'scoped memory for tpu_custom_call.1']
    #allocation8 [shape = 'u8[65536]{0}', space=vmem, size = 0x10000, scoped, tag = 'input window, operand 3, single buffered']
    #allocation9 [shape = 'u8[8192]{0}', space=vmem, size = 0x2000, scoped, tag = 'output window, operand 0']
    %12 = vsyncpa [#allocation4], 0
    %s13 = scalar_lea.sflag [#allocation4], 1
    %14 = vsyncpa %s13, 0
    %15 = vsyncpa [#allocation7], 0
    %16 = vsyncpa [#allocation5], 0
    %s17 = scalar_lea.sflag [#allocation5], 1
    %18 = vsyncpa %s17, 0
    loop: start=0, step=1, limit=4
    $region2: #{tpu_custom_call.1} parent=1 // loop_pre_header
      _
    $region3: #{tpu_custom_call.1} parent=1 // loop_header
      %s20 = sphi 0, %s24
      %p21 = scmp.ge.s32.totalorder %s20, 4
      %s27 = sphi 0, %s39
      %s28 = sphi 0, %s35
      %s29 = sphi 0, %s27
      %s30 = sphi 0, %s28
      %s31 = sphi 0, %s29
      %s32 = sphi 0, %s30
      %s42 = sphi 0, %s44
      %s45 = sphi 0, %s42
      %s46 = sphi 0, %s45
      %s62 = sphi 0, %s46
      %s68 = sphi 0, %s70
      %s71 = sphi 0, %s68
      %s72 = sphi 0, %s71
      %s88 = sphi 0, %s72
      %s94 = sphi 0, %s96
      %s97 = sphi 0, %s94
      %s98 = sphi 0, %s97
      %s114 = sphi 0, %s98
      %s120 = sphi 0, %s122
      %s123 = sphi 0, %s120
      %s124 = sphi 0, %s123
      %s140 = sphi 0, %s124
      %s144 = sphi 0, %s144
      %s146 = sphi 0, %s144
      %s147 = sphi 0, %s146
      %s161 = sphi 0, %s147
      %s165 = sphi 0, %s165
      %s167 = sphi 0, %s165
      %s168 = sphi 0, %s167
      %s182 = sphi 0, %s168
      %s186 = sphi 0, %s186
      %s188 = sphi 0, %s186
      %s189 = sphi 0, %s188
      %s203 = sphi 0, %s189
      %s209 = sphi 0, %s211
      %s212 = sphi 0, %s209
      %s213 = sphi 0, %s212
      %s229 = sphi 0, %s213
    $region4: #{tpu_custom_call.1} parent=1 // loop_header_branch
      %23 = sbr.rel (%p21) target = $region8
    $region5: #{tpu_custom_call.1} parent=1 // loop_body
      %s25 = ssub.s32 %s20, 1
      %s26 = ssub.s32 %s20, 2
      %s33 = sadd.s32 1, %s28
      %p34 = scmp.ge.s32.totalorder %s33, 1
      %s35 = scalar_select %p34, 0, %s33
      %s36 = sadd.s32 1, %s27
      %s37 = scalar_select %p34, %s36, %s27
      %p38 = scmp.ge.s32.totalorder %s37, 2
      %s39 = scalar_select %p38, 0, %s37
      %s40 = ssub.s32 %s27, %s39
      %p41 = scmp.eq.s32.totalorder %s40, 0
      %s43 = sadd.s32 %s42, 1
      %s44 = scalar_select %p41, %s42, %s43
      %p47 = pneg %p41
      %p48 = scmp.eq.s32.totalorder %s20, 1
      %p49 = por %p47, %p48
      %p50 = scmp.ne.s32.totalorder %s42, %s45
      %p51 = scmp.eq.s32.totalorder %s20, 0
      %p52 = por %p50, %p51
      %p53 = scmp.ne.s32.totalorder %s42, %s45
      %p54 = scmp.eq.s32.totalorder %s25, 1
      %p55 = por %p53, %p54
      %p56 = scmp.ne.s32.totalorder %s45, %s46
      %p57 = scmp.eq.s32.totalorder %s25, 0
      %p58 = por %p56, %p57
      %p59 = scmp.ne.s32.totalorder %s45, %s46
      %p60 = scmp.eq.s32.totalorder %s26, 1
      %p61 = por %p59, %p60
      %p63 = scmp.ne.s32.totalorder %s46, %s62
      %p64 = scmp.eq.s32.totalorder %s26, 0
      %p65 = por %p63, %p64
      %s66 = ssub.s32 %s28, %s35
      %p67 = scmp.eq.s32.totalorder %s66, 0
      %s69 = sadd.s32 %s68, 1
      %s70 = scalar_select %p67, %s68, %s69
      %p73 = pneg %p67
      %p74 = scmp.eq.s32.totalorder %s20, 1
      %p75 = por %p73, %p74
      %p76 = scmp.ne.s32.totalorder %s68, %s71
      %p77 = scmp.eq.s32.totalorder %s20, 0
      %p78 = por %p76, %p77
      %p79 = scmp.ne.s32.totalorder %s68, %s71
      %p80 = scmp.eq.s32.totalorder %s25, 1
      %p81 = por %p79, %p80
      %p82 = scmp.ne.s32.totalorder %s71, %s72
      %p83 = scmp.eq.s32.totalorder %s25, 0
      %p84 = por %p82, %p83
      %p85 = scmp.ne.s32.totalorder %s71, %s72
      %p86 = scmp.eq.s32.totalorder %s26, 1
      %p87 = por %p85, %p86
      %p89 = scmp.ne.s32.totalorder %s72, %s88
      %p90 = scmp.eq.s32.totalorder %s26, 0
      %p91 = por %p89, %p90
      %s92 = ssub.s32 %s28, %s35
      %p93 = scmp.eq.s32.totalorder %s92, 0
      %s95 = sadd.s32 %s94, 1
      %s96 = scalar_select %p93, %s94, %s95
      %p99 = pneg %p93
      %p100 = scmp.eq.s32.totalorder %s20, 1
      %p101 = por %p99, %p100
      %p102 = scmp.ne.s32.totalorder %s94, %s97
      %p103 = scmp.eq.s32.totalorder %s20, 0
      %p104 = por %p102, %p103
      %p105 = scmp.ne.s32.totalorder %s94, %s97
      %p106 = scmp.eq.s32.totalorder %s25, 1
      %p107 = por %p105, %p106
      %p108 = scmp.ne.s32.totalorder %s97, %s98
      %p109 = scmp.eq.s32.totalorder %s25, 0
      %p110 = por %p108, %p109
      %p111 = scmp.ne.s32.totalorder %s97, %s98
      %p112 = scmp.eq.s32.totalorder %s26, 1
      %p113 = por %p111, %p112
      %p115 = scmp.ne.s32.totalorder %s98, %s114
      %p116 = scmp.eq.s32.totalorder %s26, 0
      %p117 = por %p115, %p116
      %s118 = ssub.s32 %s28, %s35
      %p119 = scmp.eq.s32.totalorder %s118, 0
      %s121 = sadd.s32 %s120, 1
      %s122 = scalar_select %p119, %s120, %s121
      %p125 = pneg %p119
      %p126 = scmp.eq.s32.totalorder %s20, 1
      %p127 = por %p125, %p126
      %p128 = scmp.ne.s32.totalorder %s120, %s123
      %p129 = scmp.eq.s32.totalorder %s20, 0
      %p130 = por %p128, %p129
      %p131 = scmp.ne.s32.totalorder %s120, %s123
      %p132 = scmp.eq.s32.totalorder %s25, 1
      %p133 = por %p131, %p132
      %p134 = scmp.ne.s32.totalorder %s123, %s124
      %p135 = scmp.eq.s32.totalorder %s25, 0
      %p136 = por %p134, %p135
      %p137 = scmp.ne.s32.totalorder %s123, %s124
      %p138 = scmp.eq.s32.totalorder %s26, 1
      %p139 = por %p137, %p138
      %p141 = scmp.ne.s32.totalorder %s124, %s140
      %p142 = scmp.eq.s32.totalorder %s26, 0
      %p143 = por %p141, %p142
      %s145 = sadd.s32 %s144, 1
      %p148 = scmp.eq.s32.totalorder %s20, 1
      %p149 = scmp.ne.s32.totalorder %s144, %s146
      %p150 = scmp.eq.s32.totalorder %s20, 0
      %p151 = por %p149, %p150
      %p152 = scmp.ne.s32.totalorder %s144, %s146
      %p153 = scmp.eq.s32.totalorder %s25, 1
      %p154 = por %p152, %p153
      %p155 = scmp.ne.s32.totalorder %s146, %s147
      %p156 = scmp.eq.s32.totalorder %s25, 0
      %p157 = por %p155, %p156
      %p158 = scmp.ne.s32.totalorder %s146, %s147
      %p159 = scmp.eq.s32.totalorder %s26, 1
      %p160 = por %p158, %p159
      %p162 = scmp.ne.s32.totalorder %s147, %s161
      %p163 = scmp.eq.s32.totalorder %s26, 0
      %p164 = por %p162, %p163
      %s166 = sadd.s32 %s165, 1
      %p169 = scmp.eq.s32.totalorder %s20, 1
      %p170 = scmp.ne.s32.totalorder %s165, %s167
      %p171 = scmp.eq.s32.totalorder %s20, 0
      %p172 = por %p170, %p171
      %p173 = scmp.ne.s32.totalorder %s165, %s167
      %p174 = scmp.eq.s32.totalorder %s25, 1
      %p175 = por %p173, %p174
      %p176 = scmp.ne.s32.totalorder %s167, %s168
      %p177 = scmp.eq.s32.totalorder %s25, 0
      %p178 = por %p176, %p177
      %p179 = scmp.ne.s32.totalorder %s167, %s168
      %p180 = scmp.eq.s32.totalorder %s26, 1
      %p181 = por %p179, %p180
      %p183 = scmp.ne.s32.totalorder %s168, %s182
      %p184 = scmp.eq.s32.totalorder %s26, 0
      %p185 = por %p183, %p184
      %s187 = sadd.s32 %s186, 1
      %p190 = scmp.eq.s32.totalorder %s20, 1
      %p191 = scmp.ne.s32.totalorder %s186, %s188
      %p192 = scmp.eq.s32.totalorder %s20, 0
      %p193 = por %p191, %p192
      %p194 = scmp.ne.s32.totalorder %s186, %s188
      %p195 = scmp.eq.s32.totalorder %s25, 1
      %p196 = por %p194, %p195
      %p197 = scmp.ne.s32.totalorder %s188, %s189
      %p198 = scmp.eq.s32.totalorder %s25, 0
      %p199 = por %p197, %p198
      %p200 = scmp.ne.s32.totalorder %s188, %s189
      %p201 = scmp.eq.s32.totalorder %s26, 1
      %p202 = por %p200, %p201
      %p204 = scmp.ne.s32.totalorder %s189, %s203
      %p205 = scmp.eq.s32.totalorder %s26, 0
      %p206 = por %p204, %p205
      %s207 = ssub.s32 %s27, %s39
      %p208 = scmp.eq.s32.totalorder %s207, 0
      %s210 = sadd.s32 %s209, 1
      %s211 = scalar_select %p208, %s209, %s210
      %p214 = pneg %p208
      %p215 = scmp.eq.s32.totalorder %s20, 1
      %p216 = por %p214, %p215
      %p217 = scmp.ne.s32.totalorder %s209, %s212
      %p218 = scmp.eq.s32.totalorder %s20, 0
      %p219 = por %p217, %p218
      %p220 = scmp.ne.s32.totalorder %s209, %s212
      %p221 = scmp.eq.s32.totalorder %s25, 1
      %p222 = por %p220, %p221
      %p223 = scmp.ne.s32.totalorder %s212, %s213
      %p224 = scmp.eq.s32.totalorder %s25, 0
      %p225 = por %p223, %p224
      %p226 = scmp.ne.s32.totalorder %s212, %s213
      %p227 = scmp.eq.s32.totalorder %s26, 1
      %p228 = por %p226, %p227
      %p230 = scmp.ne.s32.totalorder %s213, %s229
      %p231 = scmp.eq.s32.totalorder %s26, 0
      %p232 = por %p230, %p231
      %p233 = scmp.le.s32.totalorder 1, %s20
      %p234 = scmp.lt.s32.totalorder %s20, 3
      %p235 = pnand %p233, %p234
      %p236 = pneg %p235
      // Predicated region
      $region9: #{tpu_custom_call.1} parent=5 // pred_check
        _
      $region10: #{tpu_custom_call.1} parent=5 // pred_check_branch
        %238 = sbr.rel (%p235) target = $region12
      $region11: #{tpu_custom_call.1} parent=5 // pred_region
        %s239 = ssub.s32 %s20, 1
        // Predicated region
        $region13: #{tpu_custom_call.1} parent=11 // pred_check
          %p240 = pneg %p84
        $region14: #{tpu_custom_call.1} parent=11 // pred_check_branch
          %242 = sbr.rel (%p240) target = $region16
        $region15: #{tpu_custom_call.1} parent=11 // pred_region
          %s244 = ssub.s32 2048, 2048
          %245 = vsyncadd [#allocation7], %s244
          %s246 = smul.addr %s30, 128
          %s247 = scalar_lea.hbm %s1, %s246
          %s248 = sshll.u32 [#allocation6], 4
          %s249 = int_to_ptr.vmem [resolvable:$true] %s248
          %254 = dma.hbm_to_vmem [thread:$0]  %s247, 2048, %s249, [#allocation7], 128, 128, 8
        $region16: #{tpu_custom_call.1} parent=11 // pred_fallthru
          _
        // Predicated region
        $region17: #{tpu_custom_call.1} parent=11 // pred_check
          %p255 = pneg %p110
        $region18: #{tpu_custom_call.1} parent=11 // pred_check_branch
          %257 = sbr.rel (%p255) target = $region20
        $region19: #{tpu_custom_call.1} parent=11 // pred_region
          %p258 = scmp.lt.s32.totalorder %s30, 0
          %s259 = scalar_select %p258, %s30, 0
          %s260 = scalar_lea.vmem %s2, %s259
        $region20: #{tpu_custom_call.1} parent=11 // pred_fallthru
          _
        // Predicated region
        $region21: #{tpu_custom_call.1} parent=11 // pred_check
          %p261 = pneg %p136
        $region22: #{tpu_custom_call.1} parent=11 // pred_check_branch
          %263 = sbr.rel (%p261) target = $region24
        $region23: #{tpu_custom_call.1} parent=11 // pred_region
          %s264 = smul.u32 16, %s30
          %s266 = ssub.s32 2048, 2048
          %267 = vsyncadd [#allocation7], %s266
          %s268 = smul.addr %s264, 128
          %s269 = scalar_lea.hbm %s3, %s268
          %s270 = sshll.u32 [#allocation8], 4
          %s271 = int_to_ptr.vmem [resolvable:$true] %s270
          %276 = dma.hbm_to_vmem [thread:$0]  %s269, 2048, %s271, [#allocation7], 128, 128, 8
        $region24: #{tpu_custom_call.1} parent=11 // pred_fallthru
          _
        // Predicated region
        $region25: #{tpu_custom_call.1} parent=11 // pred_check
          %p277 = pneg %p157
        $region26: #{tpu_custom_call.1} parent=11 // pred_check_branch
          %279 = sbr.rel (%p277) target = $region28
        $region27: #{tpu_custom_call.1} parent=11 // pred_region
          _
        $region28: #{tpu_custom_call.1} parent=11 // pred_fallthru
          _
        // Predicated region
        $region29: #{tpu_custom_call.1} parent=11 // pred_check
          %p280 = pneg %p178
        $region30: #{tpu_custom_call.1} parent=11 // pred_check_branch
          %282 = sbr.rel (%p280) target = $region32
        $region31: #{tpu_custom_call.1} parent=11 // pred_region
          _
        $region32: #{tpu_custom_call.1} parent=11 // pred_fallthru
          _
        // Predicated region
        $region33: #{tpu_custom_call.1} parent=11 // pred_check
          %p283 = pneg %p199
        $region34: #{tpu_custom_call.1} parent=11 // pred_check_branch
          %285 = sbr.rel (%p283) target = $region36
        $region35: #{tpu_custom_call.1} parent=11 // pred_region
          _
        $region36: #{tpu_custom_call.1} parent=11 // pred_fallthru
          _
      $region12: #{tpu_custom_call.1} parent=5 // pred_fallthru
        _
      %p286 = scmp.lt.s32.totalorder %s20, 2
      // Predicated region
      $region37: #{tpu_custom_call.1} parent=5 // pred_check
        %p287 = pneg %p286
      $region38: #{tpu_custom_call.1} parent=5 // pred_check_branch
        %289 = sbr.rel (%p287) target = $region40
      $region39: #{tpu_custom_call.1} parent=5 // pred_region
        // Predicated region
        $region41: #{tpu_custom_call.1} parent=39 // pred_check
          %p290 = pneg %p52
        $region42: #{tpu_custom_call.1} parent=39 // pred_check_branch
          %292 = sbr.rel (%p290) target = $region44
        $region43: #{tpu_custom_call.1} parent=39 // pred_region
          %s293 = sand.u32 %s42, 1
          %s294 = scalar_lea.sflag [#allocation4], %s293
          %s295 = sand.u32 %s42, 1
          %s296 = smul.addr %s295, 8
          %s297 = scalar_lea.vmem [#allocation3], %s296
          %s299 = ssub.s32 128, 128
          %300 = vsyncadd %s294, %s299
          %s301 = smul.addr %s27, 128
          %s302 = scalar_lea.hbm %s0, %s301
          %s304 = sshll.u32 %s297, 4
          %s305 = int_to_ptr.vmem [resolvable:$true] %s304
          %307 = dma.hbm_to_vmem [thread:$0]  %s302, 128, %s305, %s294
        $region44: #{tpu_custom_call.1} parent=39 // pred_fallthru
          _
      $region40: #{tpu_custom_call.1} parent=5 // pred_fallthru
        _
      %p308 = scmp.le.s32.totalorder 1, %s20
      %p309 = scmp.lt.s32.totalorder %s20, 3
      %p310 = pnand %p308, %p309
      %p311 = pneg %p310
      // Predicated region
      $region45: #{tpu_custom_call.1} parent=5 // pred_check
        _
      $region46: #{tpu_custom_call.1} parent=5 // pred_check_branch
        %313 = sbr.rel (%p310) target = $region48
      $region47: #{tpu_custom_call.1} parent=5 // pred_region
        %s314 = ssub.s32 %s20, 1
        %s315 = sand.u32 %s45, 1
        %s316 = scalar_lea.sflag [#allocation4], %s315
        %s317 = sand.u32 %s45, 1
        %s318 = smul.addr %s317, 8
        %s319 = scalar_lea.vmem [#allocation3], %s318
        // Predicated region
        $region49: #{tpu_custom_call.1} parent=47 // pred_check
          %p320 = pneg %p58
        $region50: #{tpu_custom_call.1} parent=47 // pred_check_branch
          %322 = sbr.rel (%p320) target = $region52
        $region51: #{tpu_custom_call.1} parent=47 // pred_region
          %323 = dma.done %s316, 128
        $region52: #{tpu_custom_call.1} parent=47 // pred_fallthru
          _
        // Predicated region
        $region53: #{tpu_custom_call.1} parent=47 // pred_check
          %p324 = pneg %p84
        $region54: #{tpu_custom_call.1} parent=47 // pred_check_branch
          %326 = sbr.rel (%p324) target = $region56
        $region55: #{tpu_custom_call.1} parent=47 // pred_region
          %327 = dma.done [#allocation7], 2048
        $region56: #{tpu_custom_call.1} parent=47 // pred_fallthru
          _
        // Predicated region
        $region57: #{tpu_custom_call.1} parent=47 // pred_check
          %p328 = pneg %p136
        $region58: #{tpu_custom_call.1} parent=47 // pred_check_branch
          %330 = sbr.rel (%p328) target = $region60
        $region59: #{tpu_custom_call.1} parent=47 // pred_region
          %331 = dma.done [#allocation7], 2048
        $region60: #{tpu_custom_call.1} parent=47 // pred_fallthru
          _
        %s332 = sand.u32 %s45, 1
        %s333 = scalar_lea.sflag [#allocation4], %s332
        %s334 = sand.u32 %s45, 1
        %s335 = smul.addr %s334, 8
        %s336 = scalar_lea.vmem [#allocation3], %s335
        %p337 = pneg %p58
        %p338 = pneg %p55
        %p339 = pneg %p84
        %p340 = pneg %p81
        %p341 = scmp.lt.s32.totalorder %s30, 0
        %s342 = scalar_select %p341, %s30, 0
        %s343 = scalar_lea.vmem %s2, %s342
        %p344 = pneg %p110
        %p345 = pneg %p107
        %p346 = pneg %p136
        %p347 = pneg %p133
        %p348 = pneg %p157
        %p349 = pneg %p154
        %p350 = pneg %p178
        %p351 = pneg %p175
        %p352 = pneg %p199
        %p353 = pneg %p196
        %p354 = pneg %p225
        %p355 = pneg %p222
        %s356 = sand.u32 %s212, 1
        %s357 = scalar_lea.sflag [#allocation5], %s356
        %s358 = sand.u32 %s212, 1
        %s359 = smul.addr %s358, 8
        %s360 = scalar_lea.vmem [#allocation9], %s359
        %p361 = scmp.lt.s32.totalorder %s30, 0
        %s362 = scalar_select %p361, %s30, 0
        %s363 = scalar_lea.vmem %s2, %s362
        %s364 = smul.u32 16, %s30
        %p365 = scmp.eq.s32.totalorder %s30, 0
        // Predicated region
        $region61: #{tpu_custom_call.1} parent=47 // pred_check
          %p366 = pneg %p365
        $region62: #{tpu_custom_call.1} parent=47 // pred_check_branch
          %368 = sbr.rel (%p366) target = $region64
        $region63: #{tpu_custom_call.1} parent=47 // pred_region
          %369 = vst [vmem:[#allocation2] sm:$0xff] 0.0
        $region64: #{tpu_custom_call.1} parent=47 // pred_fallthru
          _
        %v370 = vld [vmem:[#allocation6] sm:$0xff]
        %v371 = vld [vmem:[#allocation6 + $0x8] sm:$0xff]
        %v372 = vld [vmem:[#allocation6 + $0x10] sm:$0xff]
        %v373 = vld [vmem:[#allocation6 + $0x18] sm:$0xff]
        %v374 = vld [vmem:[#allocation6 + $0x20] sm:$0xff]
        %v375 = vld [vmem:[#allocation6 + $0x28] sm:$0xff]
        %v376 = vld [vmem:[#allocation6 + $0x30] sm:$0xff]
        %v377 = vld [vmem:[#allocation6 + $0x38] sm:$0xff]
        %v378 = vld [vmem:[#allocation6 + $0x40] sm:$0xff]
        %v379 = vld [vmem:[#allocation6 + $0x48] sm:$0xff]
        %v380 = vld [vmem:[#allocation6 + $0x50] sm:$0xff]
        %v381 = vld [vmem:[#allocation6 + $0x58] sm:$0xff]
        %v382 = vld [vmem:[#allocation6 + $0x60] sm:$0xff]
        %v383 = vld [vmem:[#allocation6 + $0x68] sm:$0xff]
        %v384 = vld [vmem:[#allocation6 + $0x70] sm:$0xff]
        %v385 = vld [vmem:[#allocation6 + $0x78] sm:$0xff]
        %v386 = vld [vmem:[#allocation8] sm:$0xff]
        %v387 = vld [vmem:[#allocation8 + $0x8] sm:$0xff]
        %v388 = vld [vmem:[#allocation8 + $0x10] sm:$0xff]
        %v389 = vld [vmem:[#allocation8 + $0x18] sm:$0xff]
        %v390 = vld [vmem:[#allocation8 + $0x20] sm:$0xff]
        %v391 = vld [vmem:[#allocation8 + $0x28] sm:$0xff]
        %v392 = vld [vmem:[#allocation8 + $0x30] sm:$0xff]
        %v393 = vld [vmem:[#allocation8 + $0x38] sm:$0xff]
        %v394 = vld [vmem:[#allocation8 + $0x40] sm:$0xff]
        %v395 = vld [vmem:[#allocation8 + $0x48] sm:$0xff]
        %v396 = vld [vmem:[#allocation8 + $0x50] sm:$0xff]
        %v397 = vld [vmem:[#allocation8 + $0x58] sm:$0xff]
        %v398 = vld [vmem:[#allocation8 + $0x60] sm:$0xff]
        %v399 = vld [vmem:[#allocation8 + $0x68] sm:$0xff]
        %v400 = vld [vmem:[#allocation8 + $0x70] sm:$0xff]
        %v401 = vld [vmem:[#allocation8 + $0x78] sm:$0xff]
        %v402 = vld [vmem:[%s319] sm:$0xff]
        %v403 = vld [vmem:[%s363] sm:$0x1]
        %v405 = vlaneseq
        %v406 = vshrl.u32 %v405, 7
        %v407 = vsub.s32 0, %v406
        %v408 = vrot.slane %v403, %v407
        %410 = vmatprep.subr.mxu0 0.0
        %411 = vmatpush1.msra.mxu0 %v385
        %412 = vmatprep.subr.mxu0 0.0
        %413 = vmatpush1.msra.mxu0 %v384
        %414 = vmatprep.subr.mxu0 0.0
        %415 = vmatpush1.msra.mxu0 %v383
        %416 = vmatprep.subr.mxu0 0.0
        %417 = vmatpush1.msra.mxu0 %v382
        %418 = vmatprep.subr.mxu0 0.0
        %419 = vmatpush1.msra.mxu0 %v381
        %420 = vmatprep.subr.mxu0 0.0
        %421 = vmatpush1.msra.mxu0 %v380
        %422 = vmatprep.subr.mxu0 0.0
        %423 = vmatpush1.msra.mxu0 %v379
        %424 = vmatprep.subr.mxu0 0.0
        %425 = vmatpush1.msra.mxu0 %v378
        %426 = vmatprep.subr.mxu0 0.0
        %427 = vmatpush1.msra.mxu0 %v377
        %428 = vmatprep.subr.mxu0 0.0
        %429 = vmatpush1.msra.mxu0 %v376
        %430 = vmatprep.subr.mxu0 0.0
        %431 = vmatpush1.msra.mxu0 %v375
        %432 = vmatprep.subr.mxu0 0.0
        %433 = vmatpush1.msra.mxu0 %v374
        %434 = vmatprep.subr.mxu0 0.0
        %435 = vmatpush1.msra.mxu0 %v373
        %436 = vmatprep.subr.mxu0 0.0
        %437 = vmatpush1.msra.mxu0 %v372
        %438 = vmatprep.subr.mxu0 0.0
        %439 = vmatpush1.msra.mxu0 %v371
        %440 = vmatprep.subr.mxu0 0.0
        %441 = vmatpush1.msra.mxu0 %v370
        %442 = vmatprep.subr.mxu0 0.0
        %443 = vmatpush2.msra.mxu0 0.0
        %444 = vmatprep.subr.mxu0 0.0
        %445 = vmatpush2.msra.mxu0 0.0
        %446 = vmatprep.subr.mxu0 0.0
        %447 = vmatpush2.msra.mxu0 0.0
        %448 = vmatprep.subr.mxu0 0.0
        %449 = vmatpush2.msra.mxu0 0.0
        %450 = vmatprep.subr.mxu0 0.0
        %451 = vmatpush2.msra.mxu0 0.0
        %452 = vmatprep.subr.mxu0 0.0
        %453 = vmatpush2.msra.mxu0 0.0
        %454 = vmatprep.subr.mxu0 0.0
        %455 = vmatpush2.msra.mxu0 0.0
        %456 = vmatprep.subr.mxu0 0.0
        %457 = vmatpush2.msra.mxu0 0.0
        %458 = vmatprep.subr.mxu0 0.0
        %459 = vmatpush2.msra.mxu0 0.0
        %460 = vmatprep.subr.mxu0 0.0
        %461 = vmatpush2.msra.mxu0 0.0
        %462 = vmatprep.subr.mxu0 0.0
        %463 = vmatpush2.msra.mxu0 0.0
        %464 = vmatprep.subr.mxu0 0.0
        %465 = vmatpush2.msra.mxu0 0.0
        %466 = vmatprep.subr.mxu0 0.0
        %467 = vmatpush2.msra.mxu0 0.0
        %468 = vmatprep.subr.mxu0 0.0
        %469 = vmatpush2.msra.mxu0 0.0
        %470 = vmatprep.subr.mxu0 0.0
        %471 = vmatpush2.msra.mxu0 0.0
        %472 = vmatprep.subr.mxu0 0.0
        %473 = vmatpush2.msra.mxu0 0.0
        %474 = vmatprep.mubr.f32.mxu0 0.0
        %475 = vmatmul.mubr.f32.gmra.mxu0 %v402
        %v476 = vpop.f32.mrf.mxu0
        %v477 = vadd.f32 %v408, %v476
        %v478 = vpop.f32.mrf.mxu0
        %479 = vdwg.mxu0
        %v480 = vmax.f32 %v477, 0.0
        %v481 = vld [vmem:[#allocation2] sm:$0xff]
        %482 = vmatprep.subr.mxu0 0.0
        %483 = vmatpush1.msra.mxu0 %v401
        %484 = vmatprep.subr.mxu0 0.0
        %485 = vmatpush1.msra.mxu0 %v400
        %486 = vmatprep.subr.mxu0 0.0
        %487 = vmatpush1.msra.mxu0 %v399
        %488 = vmatprep.subr.mxu0 0.0
        %489 = vmatpush1.msra.mxu0 %v398
        %490 = vmatprep.subr.mxu0 0.0
        %491 = vmatpush1.msra.mxu0 %v397
        %492 = vmatprep.subr.mxu0 0.0
        %493 = vmatpush1.msra.mxu0 %v396
        %494 = vmatprep.subr.mxu0 0.0
        %495 = vmatpush1.msra.mxu0 %v395
        %496 = vmatprep.subr.mxu0 0.0
        %497 = vmatpush1.msra.mxu0 %v394
        %498 = vmatprep.subr.mxu0 0.0
        %499 = vmatpush1.msra.mxu0 %v393
        %500 = vmatprep.subr.mxu0 0.0
        %501 = vmatpush1.msra.mxu0 %v392
        %502 = vmatprep.subr.mxu0 0.0
        %503 = vmatpush1.msra.mxu0 %v391
        %504 = vmatprep.subr.mxu0 0.0
        %505 = vmatpush1.msra.mxu0 %v390
        %506 = vmatprep.subr.mxu0 0.0
        %507 = vmatpush1.msra.mxu0 %v389
        %508 = vmatprep.subr.mxu0 0.0
        %509 = vmatpush1.msra.mxu0 %v388
        %510 = vmatprep.subr.mxu0 0.0
        %511 = vmatpush1.msra.mxu0 %v387
        %512 = vmatprep.subr.mxu0 0.0
        %513 = vmatpush1.msra.mxu0 %v386
        %514 = vmatprep.subr.mxu0 0.0
        %515 = vmatpush2.msra.mxu0 0.0
        %516 = vmatprep.subr.mxu0 0.0
        %517 = vmatpush2.msra.mxu0 0.0
        %518 = vmatprep.subr.mxu0 0.0
        %519 = vmatpush2.msra.mxu0 0.0
        %520 = vmatprep.subr.mxu0 0.0
        %521 = vmatpush2.msra.mxu0 0.0
        %522 = vmatprep.subr.mxu0 0.0
        %523 = vmatpush2.msra.mxu0 0.0
        %524 = vmatprep.subr.mxu0 0.0
        %525 = vmatpush2.msra.mxu0 0.0
        %526 = vmatprep.subr.mxu0 0.0
        %527 = vmatpush2.msra.mxu0 0.0
        %528 = vmatprep.subr.mxu0 0.0
        %529 = vmatpush2.msra.mxu0 0.0
        %530 = vmatprep.subr.mxu0 0.0
        %531 = vmatpush2.msra.mxu0 0.0
        %532 = vmatprep.subr.mxu0 0.0
        %533 = vmatpush2.msra.mxu0 0.0
        %534 = vmatprep.subr.mxu0 0.0
        %535 = vmatpush2.msra.mxu0 0.0
        %536 = vmatprep.subr.mxu0 0.0
        %537 = vmatpush2.msra.mxu0 0.0
        %538 = vmatprep.subr.mxu0 0.0
        %539 = vmatpush2.msra.mxu0 0.0
        %540 = vmatprep.subr.mxu0 0.0
        %541 = vmatpush2.msra.mxu0 0.0
        %542 = vmatprep.subr.mxu0 0.0
        %543 = vmatpush2.msra.mxu0 0.0
        %544 = vmatprep.subr.mxu0 0.0
        %545 = vmatpush2.msra.mxu0 0.0
        %546 = vmatprep.mubr.f32.mxu0 0.0
        %547 = vmatmul.mubr.f32.gmra.mxu0 %v480
        %v548 = vpop.f32.mrf.mxu0
        %v549 = vadd.f32 0.0, %v548
        %v550 = vpop.f32.mrf.mxu0
        %551 = vdwg.mxu0
        %v552 = vadd.f32 %v481, %v549
        %553 = vst [vmem:[#allocation2] sm:$0xff] %v552
        // Predicated region
        $region65: #{tpu_custom_call.1} parent=47 // pred_check
          %p554 = pneg %p365
        $region66: #{tpu_custom_call.1} parent=47 // pred_check_branch
          %556 = sbr.rel (%p554) target = $region68
        $region67: #{tpu_custom_call.1} parent=47 // pred_region
          %v557 = vld [vmem:[%s4] sm:$0x1]
          %v558 = vld [vmem:[%s5] sm:$0x1]
          %v559 = vld [vmem:[%s6] sm:$0x1]
          %v560 = vld [vmem:[#allocation2] sm:$0xff]
          %v561 = vadd.f32 %v402, %v560
          %v563 = vlaneseq
          %v564 = vshrl.u32 %v563, 7
          %v565 = vsub.s32 0, %v564
          %v566 = vrot.slane %v557, %v565
          %v568 = vadd.f32 %v561, %v566
          %569 = vadd.xlane.f32.xlu0 %v568
          %v570 = vpop.xlane.xlu0 %569
          %v571 = vmul.f32 %v570, 0.03125
          %v572 = vsub.f32 %v568, %v571
          %v573 = vlaneseq
          %v574 = vand.u32 %v573, 127
          %vm575 = vcmp.lt.s32.totalorder %v574, 32
          %v576 = vsel %vm575, %v572, 0.0
          %v577 = vmul.f32 %v576, %v576
          %578 = vadd.xlane.f32.xlu0 %v577
          %v579 = vpop.xlane.xlu0 %578
          %v580 = vmul.f32 %v579, 0.03125
          %v581 = vadd.f32 %v580, 1e-05
          %v582 = vrsqrt.pop %v581
          %v583 = vmul.f32 %v572, %v582
          %v585 = vlaneseq
          %v586 = vshrl.u32 %v585, 7
          %v587 = vsub.s32 0, %v586
          %v588 = vrot.slane %v558, %v587
          %v590 = vmul.f32 %v583, %v588
          %v592 = vlaneseq
          %v593 = vshrl.u32 %v592, 7
          %v594 = vsub.s32 0, %v593
          %v595 = vrot.slane %v559, %v594
          %v597 = vadd.f32 %v590, %v595
          %598 = vst [vmem:[%s360] sm:$0xff] %v597
        $region68: #{tpu_custom_call.1} parent=47 // pred_fallthru
          _
        %s599 = sand.u32 %s212, 1
        %s600 = scalar_lea.sflag [#allocation5], %s599
        %s601 = sand.u32 %s212, 1
        %s602 = smul.addr %s601, 8
        %s603 = scalar_lea.vmem [#allocation9], %s602
        // Predicated region
        $region69: #{tpu_custom_call.1} parent=47 // pred_check
          %p604 = pneg %p222
        $region70: #{tpu_custom_call.1} parent=47 // pred_check_branch
          %606 = sbr.rel (%p604) target = $region72
        $region71: #{tpu_custom_call.1} parent=47 // pred_region
          %s608 = ssub.s32 128, 128
          %609 = vsyncadd %s600, %s608
          %s610 = smul.addr %s29, 128
          %s611 = scalar_lea.hbm %s7, %s610
          %s613 = sshll.u32 %s603, 4
          %s614 = int_to_ptr.vmem [resolvable:$true] %s613
          %616 = dma.vmem_to_hbm [thread:$0]  %s614, 128, %s611, %s600
        $region72: #{tpu_custom_call.1} parent=47 // pred_fallthru
          _
      $region48: #{tpu_custom_call.1} parent=5 // pred_fallthru
        _
      %p617 = scmp.le.s32.totalorder 2, %s20
      // Predicated region
      $region73: #{tpu_custom_call.1} parent=5 // pred_check
        %p618 = pneg %p617
      $region74: #{tpu_custom_call.1} parent=5 // pred_check_branch
        %620 = sbr.rel (%p618) target = $region76
      $region75: #{tpu_custom_call.1} parent=5 // pred_region
        %s621 = ssub.s32 %s20, 2
        // Predicated region
        $region77: #{tpu_custom_call.1} parent=75 // pred_check
          %p622 = pneg %p228
        $region78: #{tpu_custom_call.1} parent=75 // pred_check_branch
          %624 = sbr.rel (%p622) target = $region80
        $region79: #{tpu_custom_call.1} parent=75 // pred_region
          %s625 = sand.u32 %s213, 1
          %s626 = scalar_lea.sflag [#allocation5], %s625
          %s627 = sand.u32 %s213, 1
          %s628 = smul.addr %s627, 8
          %s629 = scalar_lea.vmem [#allocation9], %s628
          %630 = dma.done %s626, 128
        $region80: #{tpu_custom_call.1} parent=75 // pred_fallthru
          _
      $region76: #{tpu_custom_call.1} parent=5 // pred_fallthru
        _
    $region6: #{tpu_custom_call.1} parent=1 // loop_footer
      %s24 = sadd.s32 1, %s20
    $region7: #{tpu_custom_call.1} parent=1 // loop_footer_branch
      %19 = sbr.rel target = $region3
    $region8: #{tpu_custom_call.1} parent=1 // loop_exit
      _
    %631 = vsyncpa [#allocation4], 1
    %s632 = scalar_lea.sflag [#allocation4], 1
    %633 = vsyncpa %s632, 1
    %634 = vsyncpa [#allocation7], 1
    %635 = vsyncpa [#allocation5], 1
    %s636 = scalar_lea.sflag [#allocation5], 1
    %637 = vsyncpa %s636, 1

</llo_original>
